<compile_context>
chip_gen: v5e
topology: v5e:2x2
jax: 0.10.0
libtpu: 0.0.40
codegen_flags: <defaults>
</compile_context>

<pallas_src>
import math

import jax
import jax.numpy as jnp
from jax import lax
from jax.experimental import pallas as pl
from jax.experimental.pallas import tpu as pltpu

# ---- config (mirrors `args`) ----
EMBED_DIM = 32          # args.embedding_dim
NUM_HEADS = 2           # args.num_attention_heads
N_LAYERS = 1            # args.transformer_block
MAX_SEQ_LEN = 8         # args.max_seq_len
ITEM_NUM = 50
BATCH = 2
FFN_DIM = EMBED_DIM * 4
HEAD_DIM = EMBED_DIM // NUM_HEADS


# ----------------------------------------------------------------------------
# Single fused kernel: gather + mask + user encoder + masked BCE loss
# ----------------------------------------------------------------------------
def fused_forward_kernel(seq_ids_ref, pos_ids_ref, neg_ids_ref,
                         lm_col_ref, lm_row_ref, row_start_ref,
                         emb_ref, pos_ref, ln0g_ref, ln0b_ref,
                         lnag_ref, lnab_ref,
                         wq_ref, bq_ref, wk_ref, bk_ref, wv_ref, bv_ref,
                         wo_ref, bo_ref,
                         lnfg_ref, lnfb_ref, w1_ref, b1_ref, w2_ref, b2_ref,
                         out_ref):
    B, L, D, H, Dh = BATCH, MAX_SEQ_LEN, EMBED_DIM, NUM_HEADS, HEAD_DIM
    BL = B * L
    table = emb_ref[...]                                       # (V, D)
    V = table.shape[0]

    # ---- in-kernel embedding gather: one-hot @ table on the MXU ----
    def gather(ids_ref):
        ids = ids_ref[...]                                     # (BL, 1) int32
        iota = lax.broadcasted_iota(jnp.int32, (BL, V), 1)
        onehot = (iota == ids).astype(jnp.float32)             # (BL, V)
        return jnp.dot(onehot, table, preferred_element_type=jnp.float32)

    seq_in = gather(seq_ids_ref)                               # (BL, D)
    pos_tgt = gather(pos_ids_ref)                              # (BL, D)
    neg_tgt = gather(neg_ids_ref)                              # (BL, D)

    # ---- additive attention mask on the flattened (BL, BL) score matrix ----
    # allowed(i, j) = same-batch AND causal AND key-not-padded.
    # same-batch AND causal  <=>  (j <= i) AND (j >= batch(i)*L)
    row = lax.broadcasted_iota(jnp.int32, (BL, BL), 0)
    col = lax.broadcasted_iota(jnp.int32, (BL, BL), 1)
    row_start = row_start_ref[...]                             # (BL, 1) = batch(i)*L
    key_ok = lm_col_ref[...] != 0.0                            # (1, BL) key padding
    allowed = (col <= row) & (col >= row_start) & key_ok
    mask_add = jnp.where(allowed, 0.0, -1e9).astype(jnp.float32)

    def layer_norm(h, g, b, eps):
        mu = jnp.mean(h, axis=-1, keepdims=True)
        var = jnp.mean((h - mu) ** 2, axis=-1, keepdims=True)
        return (h - mu) * lax.rsqrt(var + eps) * g + b

    # ---- positional embedding + input LayerNorm (dropout disabled: eval) ----
    pe = jnp.concatenate([pos_ref[...]] * B, axis=0)           # (BL, D)
    h = layer_norm(seq_in + pe, ln0g_ref[...], ln0b_ref[...], 1e-8)

    scale = 1.0 / math.sqrt(Dh)
    for l in range(N_LAYERS):                                  # static layer loop
        # ---- multi-head self-attention sublayer (pre-norm residual) ----
        xn = layer_norm(h, lnag_ref[l][None, :], lnab_ref[l][None, :], 1e-6)
        attn = jnp.zeros((BL, D), jnp.float32)
        for hh in range(H):                                    # static head loop
            i = l * H + hh            # per-head weights on a flat leading axis
            q = jnp.dot(xn, wq_ref[i], preferred_element_type=jnp.float32) + bq_ref[i][None, :]
            k = jnp.dot(xn, wk_ref[i], preferred_element_type=jnp.float32) + bk_ref[i][None, :]
            v = jnp.dot(xn, wv_ref[i], preferred_element_type=jnp.float32) + bv_ref[i][None, :]
            s = lax.dot_general(q, k, (((1,), (1,)), ((), ())),
                                preferred_element_type=jnp.float32)        # (BL, BL)
            p = jax.nn.softmax(s * scale + mask_add, axis=-1)
            ctx = jnp.dot(p, v, preferred_element_type=jnp.float32)        # (BL, Dh)
            # head-concat folded into the output projection: sum_h ctx_h @ Wo_h
            attn = attn + jnp.dot(ctx, wo_ref[i], preferred_element_type=jnp.float32)
        h = h + attn + bo_ref[l][None, :]

        # ---- position-wise FFN sublayer (pre-norm residual) ----
        xn2 = layer_norm(h, lnfg_ref[l][None, :], lnfb_ref[l][None, :], 1e-6)
        ff = jnp.dot(xn2, w1_ref[l], preferred_element_type=jnp.float32) + b1_ref[l][None, :]
        # TODO(synk): tanh-GELU; switch to approximate=False if the reference
        # User_Encoder uses nn.GELU() default (exact erf).
        ff = jax.nn.gelu(ff, approximate=True)
        ff = jnp.dot(ff, w2_ref[l], preferred_element_type=jnp.float32) + b2_ref[l][None, :]
        h = h + ff

    # ---- scores + masked BCEWithLogits loss (mean over log_mask != 0) ----
    pos_score = jnp.sum(h * pos_tgt, axis=-1, keepdims=True)   # (BL, 1)
    neg_score = jnp.sum(h * neg_tgt, axis=-1, keepdims=True)   # (BL, 1)
    m = (lm_row_ref[...] != 0.0).astype(jnp.float32)           # (BL, 1)
    per_tok = (jax.nn.softplus(-pos_score)                     # BCE, label = 1
               + jax.nn.softplus(neg_score)) * m               # BCE, label = 0
    total = jnp.full((1, 1), jnp.sum(per_tok), dtype=jnp.float32)
    cnt = jnp.full((1, 1), jnp.sum(m), dtype=jnp.float32)      # NaN if all padded,
    out_ref[...] = total * pl.reciprocal(cnt, approx=True)     # same as reference


# ----------------------------------------------------------------------------
# Model forward: only tiny integer/index glue outside the single pallas_call
# ----------------------------------------------------------------------------
def model_forward(params, sample_items_id, log_mask):
    B, L = BATCH, MAX_SEQ_LEN
    BL = B * L

    ids = sample_items_id.reshape(B, L + 1, 2)
    seq_ids = ids[:, :-1, 0].reshape(BL, 1)        # user-history item ids
    pos_ids = ids[:, 1:, 0].reshape(BL, 1)         # positive-target item ids
    neg_ids = ids[:, :-1, 1].reshape(BL, 1)        # negative-sample item ids

    lm = log_mask.astype(jnp.float32)
    lm_col = lm.reshape(1, BL)                     # key-padding layout
    lm_row = lm.reshape(BL, 1)                     # loss-mask layout
    # first flattened index of each query's batch (compile-time constant)
    row_start = (jnp.arange(BL, dtype=jnp.int32) // L * L).reshape(BL, 1)

    inputs = [seq_ids, pos_ids, neg_ids, lm_col, lm_row, row_start,
              params['id_emb'], params['pos'], params['ln0_g'], params['ln0_b'],
              params['lna_g'], params['lna_b'],
              params['wq'], params['bq'], params['wk'], params['bk'],
              params['wv'], params['bv'], params['wo'], params['bo'],
              params['lnf_g'], params['lnf_b'],
              params['w1'], params['b1'], params['w2'], params['b2']]

    loss = pl.pallas_call(
        fused_forward_kernel,
        out_shape=jax.ShapeDtypeStruct((1, 1), jnp.float32),
        in_specs=[pl.BlockSpec(memory_space=pltpu.MemorySpace.VMEM)] * len(inputs),
        out_specs=pl.BlockSpec(memory_space=pltpu.MemorySpace.VMEM),
    )(*inputs)
    return loss[0, 0]


# ----------------------------------------------------------------------------
# deterministic parameter init (weights ~ N(0, 0.02), biases 0, LN = (1, 0),
# id embedding xavier_normal_ like the PyTorch module).  Q/K/V/O projection
# matrices are generated as full (D, D) Linears and pre-split per head so the
# kernel never lane-slices activations.
# ----------------------------------------------------------------------------
def init_params(key):
    keys = iter(jax.random.split(key, 24))
    nrm = lambda shape, std=0.02: jax.random.normal(next(keys), shape, jnp.float32) * std
    D, F, NL, L, H = EMBED_DIM, FFN_DIM, N_LAYERS, MAX_SEQ_LEN, NUM_HEADS
    Dh = D // H
    xav_std = math.sqrt(2.0 / (ITEM_NUM + 1 + D))

    def split_out(w):   # (NL, D, D) -> (NL*H, D, Dh): heads along the output dim
        return w.reshape(NL, D, H, Dh).transpose(0, 2, 1, 3).reshape(NL * H, D, Dh)

    def split_in(w):    # (NL, D, D) -> (NL*H, Dh, D): heads along the input dim
        return w.reshape(NL, H, Dh, D).reshape(NL * H, Dh, D)

    wq_full = nrm((NL, D, D))
    wk_full = nrm((NL, D, D))
    wv_full = nrm((NL, D, D))
    wo_full = nrm((NL, D, D))

    return dict(
        id_emb=jax.random.normal(next(keys), (ITEM_NUM + 1, D), jnp.float32) * xav_std,
        pos=nrm((L, D)),
        ln0_g=jnp.ones((1, D), jnp.float32), ln0_b=jnp.zeros((1, D), jnp.float32),
        lna_g=jnp.ones((NL, D), jnp.float32), lna_b=jnp.zeros((NL, D), jnp.float32),
        wq=split_out(wq_full), bq=jnp.zeros((NL * H, Dh), jnp.float32),
        wk=split_out(wk_full), bk=jnp.zeros((NL * H, Dh), jnp.float32),
        wv=split_out(wv_full), bv=jnp.zeros((NL * H, Dh), jnp.float32),
        wo=split_in(wo_full), bo=jnp.zeros((NL, D), jnp.float32),
        lnf_g=jnp.ones((NL, D), jnp.float32), lnf_b=jnp.zeros((NL, D), jnp.float32),
        w1=nrm((NL, D, F)), b1=jnp.zeros((NL, F), jnp.float32),
        w2=nrm((NL, F, D)), b2=jnp.zeros((NL, D), jnp.float32),
    )


if __name__ == "__main__":
    key = jax.random.PRNGKey(0)
    pkey, ikey = jax.random.split(key, 2)
    params = init_params(pkey)

    # sample_items_id: flat ids, layout (B, L+1, {pos, neg}) flattened
    sample_items_id = jax.random.randint(
        ikey, (BATCH * (MAX_SEQ_LEN + 1) * 2,), 1, ITEM_NUM + 1, dtype=jnp.int32)

    # log_mask: one full sequence, one with trailing padding
    log_mask = jnp.array([[1, 1, 1, 1, 1, 1, 1, 1],
                          [1, 1, 1, 1, 1, 0, 0, 0]], dtype=jnp.int32)

    loss = jax.jit(model_forward)(params, sample_items_id, log_mask)
    loss = jax.block_until_ready(loss)
    assert loss.shape == () and bool(jnp.isfinite(loss))
    print("KERNEL_OK")
</pallas_src>

<mosaic_0001>
module attributes {stable_mosaic.version = 11 : i64} {
  func.func @fused_forward_kernel(%arg0: memref<16x1xi32, #tpu.memory_space<vmem>>, %arg1: memref<16x1xi32, #tpu.memory_space<vmem>>, %arg2: memref<16x1xi32, #tpu.memory_space<vmem>>, %arg3: memref<1x16xf32, #tpu.memory_space<vmem>>, %arg4: memref<16x1xf32, #tpu.memory_space<vmem>>, %arg5: memref<16x1xi32, #tpu.memory_space<vmem>>, %arg6: memref<51x32xf32, #tpu.memory_space<vmem>>, %arg7: memref<8x32xf32, #tpu.memory_space<vmem>>, %arg8: memref<1x32xf32, #tpu.memory_space<vmem>>, %arg9: memref<1x32xf32, #tpu.memory_space<vmem>>, %arg10: memref<1x32xf32, #tpu.memory_space<vmem>>, %arg11: memref<1x32xf32, #tpu.memory_space<vmem>>, %arg12: memref<2x32x16xf32, #tpu.memory_space<vmem>>, %arg13: memref<2x16xf32, #tpu.memory_space<vmem>>, %arg14: memref<2x32x16xf32, #tpu.memory_space<vmem>>, %arg15: memref<2x16xf32, #tpu.memory_space<vmem>>, %arg16: memref<2x32x16xf32, #tpu.memory_space<vmem>>, %arg17: memref<2x16xf32, #tpu.memory_space<vmem>>, %arg18: memref<2x16x32xf32, #tpu.memory_space<vmem>>, %arg19: memref<1x32xf32, #tpu.memory_space<vmem>>, %arg20: memref<1x32xf32, #tpu.memory_space<vmem>>, %arg21: memref<1x32xf32, #tpu.memory_space<vmem>>, %arg22: memref<1x32x128xf32, #tpu.memory_space<vmem>>, %arg23: memref<1x128xf32, #tpu.memory_space<vmem>>, %arg24: memref<1x128x32xf32, #tpu.memory_space<vmem>>, %arg25: memref<1x32xf32, #tpu.memory_space<vmem>>, %arg26: memref<1x1xf32, #tpu.memory_space<vmem>>) attributes {dimension_semantics = [], scalar_prefetch = 0 : i64, scratch_operands = 0 : i64, tpu.core_type = #tpu.core_type<tc>} {
    %c0 = arith.constant 0 : index
    %c0_0 = arith.constant 0 : index
    %0 = vector.load %arg6[%c0, %c0_0] : memref<51x32xf32, #tpu.memory_space<vmem>>, vector<51x32xf32>
    %c0_1 = arith.constant 0 : index
    %c0_2 = arith.constant 0 : index
    %1 = vector.load %arg0[%c0_1, %c0_2] : memref<16x1xi32, #tpu.memory_space<vmem>>, vector<16x1xi32>
    %2 = tpu.iota {dimensions = array<i32: 1>} : vector<16x51xi32>
    %3 = vector.broadcast %1 : vector<16x1xi32> to vector<16x51xi32>
    %4 = arith.cmpi eq, %2, %3 : vector<16x51xi32>
    %5 = arith.extui %4 : vector<16x51xi1> to vector<16x51xi32>
    %6 = arith.sitofp %5 : vector<16x51xi32> to vector<16x51xf32>
    %cst = arith.constant dense<0.000000e+00> : vector<16x32xf32>
    %7 = tpu.matmul %6, %0, %cst {dimension_numbers = #tpu.dot_dimension_numbers<[1], [0], [0], [1], [0, 0, 1, 1], [], []>} : vector<16x51xf32>, vector<51x32xf32>, vector<16x32xf32> -> vector<16x32xf32>
    %c0_3 = arith.constant 0 : index
    %c0_4 = arith.constant 0 : index
    %8 = vector.load %arg1[%c0_3, %c0_4] : memref<16x1xi32, #tpu.memory_space<vmem>>, vector<16x1xi32>
    %9 = tpu.iota {dimensions = array<i32: 1>} : vector<16x51xi32>
    %10 = vector.broadcast %8 : vector<16x1xi32> to vector<16x51xi32>
    %11 = arith.cmpi eq, %9, %10 : vector<16x51xi32>
    %12 = arith.extui %11 : vector<16x51xi1> to vector<16x51xi32>
    %13 = arith.sitofp %12 : vector<16x51xi32> to vector<16x51xf32>
    %cst_5 = arith.constant dense<0.000000e+00> : vector<16x32xf32>
    %14 = tpu.matmul %13, %0, %cst_5 {dimension_numbers = #tpu.dot_dimension_numbers<[1], [0], [0], [1], [0, 0, 1, 1], [], []>} : vector<16x51xf32>, vector<51x32xf32>, vector<16x32xf32> -> vector<16x32xf32>
    %c0_6 = arith.constant 0 : index
    %c0_7 = arith.constant 0 : index
    %15 = vector.load %arg2[%c0_6, %c0_7] : memref<16x1xi32, #tpu.memory_space<vmem>>, vector<16x1xi32>
    %16 = tpu.iota {dimensions = array<i32: 1>} : vector<16x51xi32>
    %17 = vector.broadcast %15 : vector<16x1xi32> to vector<16x51xi32>
    %18 = arith.cmpi eq, %16, %17 : vector<16x51xi32>
    %19 = arith.extui %18 : vector<16x51xi1> to vector<16x51xi32>
    %20 = arith.sitofp %19 : vector<16x51xi32> to vector<16x51xf32>
    %cst_8 = arith.constant dense<0.000000e+00> : vector<16x32xf32>
    %21 = tpu.matmul %20, %0, %cst_8 {dimension_numbers = #tpu.dot_dimension_numbers<[1], [0], [0], [1], [0, 0, 1, 1], [], []>} : vector<16x51xf32>, vector<51x32xf32>, vector<16x32xf32> -> vector<16x32xf32>
    %22 = tpu.iota {dimensions = array<i32: 0>} : vector<16x16xi32>
    %23 = tpu.iota {dimensions = array<i32: 1>} : vector<16x16xi32>
    %c0_9 = arith.constant 0 : index
    %c0_10 = arith.constant 0 : index
    %24 = vector.load %arg5[%c0_9, %c0_10] : memref<16x1xi32, #tpu.memory_space<vmem>>, vector<16x1xi32>
    %c0_11 = arith.constant 0 : index
    %c0_12 = arith.constant 0 : index
    %25 = vector.load %arg3[%c0_11, %c0_12] : memref<1x16xf32, #tpu.memory_space<vmem>>, vector<1x16xf32>
    %cst_13 = arith.constant 0.000000e+00 : f32
    %26 = vector.broadcast %cst_13 : f32 to vector<1x16xf32>
    %27 = arith.cmpf one, %25, %26 : vector<1x16xf32>
    %28 = arith.cmpi sle, %23, %22 : vector<16x16xi32>
    %29 = vector.broadcast %24 : vector<16x1xi32> to vector<16x16xi32>
    %30 = arith.cmpi sge, %23, %29 : vector<16x16xi32>
    %31 = arith.andi %28, %30 : vector<16x16xi1>
    %32 = vector.broadcast %27 : vector<1x16xi1> to vector<16x16xi1>
    %33 = arith.andi %31, %32 : vector<16x16xi1>
    %cst_14 = arith.constant 0.000000e+00 : f32
    %cst_15 = arith.constant -1.000000e+09 : f32
    %34 = vector.broadcast %cst_14 : f32 to vector<16x16xf32>
    %35 = vector.broadcast %cst_15 : f32 to vector<16x16xf32>
    %36 = arith.select %33, %34, %35 : vector<16x16xi1>, vector<16x16xf32>
    %c0_16 = arith.constant 0 : index
    %c0_17 = arith.constant 0 : index
    %37 = vector.load %arg7[%c0_16, %c0_17] : memref<8x32xf32, #tpu.memory_space<vmem>>, vector<8x32xf32>
    %38 = tpu.concatenate %37, %37 in 0 : vector<8x32xf32>, vector<8x32xf32> -> vector<16x32xf32>
    %39 = arith.addf %7, %38 : vector<16x32xf32>
    %c0_18 = arith.constant 0 : index
    %c0_19 = arith.constant 0 : index
    %40 = vector.load %arg8[%c0_18, %c0_19] : memref<1x32xf32, #tpu.memory_space<vmem>>, vector<1x32xf32>
    %c0_20 = arith.constant 0 : index
    %c0_21 = arith.constant 0 : index
    %41 = vector.load %arg9[%c0_20, %c0_21] : memref<1x32xf32, #tpu.memory_space<vmem>>, vector<1x32xf32>
    %cst_22 = arith.constant dense<0.000000e+00> : vector<16xf32>
    %42 = vector.multi_reduction <add>, %39, %cst_22 [1] : vector<16x32xf32> to vector<16xf32>
    %43 = vector.shape_cast %42 : vector<16xf32> to vector<16x1xf32>
    %cst_23 = arith.constant 3.200000e+01 : f32
    %44 = vector.broadcast %cst_23 : f32 to vector<16x1xf32>
    %45 = arith.divf %43, %44 : vector<16x1xf32>
    %46 = vector.broadcast %45 : vector<16x1xf32> to vector<16x32xf32>
    %47 = arith.subf %39, %46 : vector<16x32xf32>
    %48 = arith.mulf %47, %47 : vector<16x32xf32>
    %cst_24 = arith.constant dense<0.000000e+00> : vector<16xf32>
    %49 = vector.multi_reduction <add>, %48, %cst_24 [1] : vector<16x32xf32> to vector<16xf32>
    %50 = vector.shape_cast %49 : vector<16xf32> to vector<16x1xf32>
    %cst_25 = arith.constant 3.200000e+01 : f32
    %51 = vector.broadcast %cst_25 : f32 to vector<16x1xf32>
    %52 = arith.divf %50, %51 : vector<16x1xf32>
    %53 = vector.broadcast %45 : vector<16x1xf32> to vector<16x32xf32>
    %54 = arith.subf %39, %53 : vector<16x32xf32>
    %cst_26 = arith.constant 9.99999993E-9 : f32
    %55 = vector.broadcast %cst_26 : f32 to vector<16x1xf32>
    %56 = arith.addf %52, %55 : vector<16x1xf32>
    %57 = math.rsqrt %56 : vector<16x1xf32>
    %58 = vector.broadcast %57 : vector<16x1xf32> to vector<16x32xf32>
    %59 = arith.mulf %54, %58 : vector<16x32xf32>
    %60 = vector.broadcast %40 : vector<1x32xf32> to vector<16x32xf32>
    %61 = arith.mulf %59, %60 : vector<16x32xf32>
    %62 = vector.broadcast %41 : vector<1x32xf32> to vector<16x32xf32>
    %63 = arith.addf %61, %62 : vector<16x32xf32>
    %c0_27 = arith.constant 0 : index
    %c0_28 = arith.constant 0 : index
    %64 = vector.load %arg10[%c0_27, %c0_28] : memref<1x32xf32, #tpu.memory_space<vmem>>, vector<1x32xf32>
    %65 = vector.shape_cast %64 : vector<1x32xf32> to vector<32xf32>
    %66 = vector.shape_cast %65 : vector<32xf32> to vector<1x32xf32>
    %c0_29 = arith.constant 0 : index
    %c0_30 = arith.constant 0 : index
    %67 = vector.load %arg11[%c0_29, %c0_30] : memref<1x32xf32, #tpu.memory_space<vmem>>, vector<1x32xf32>
    %68 = vector.shape_cast %67 : vector<1x32xf32> to vector<32xf32>
    %69 = vector.shape_cast %68 : vector<32xf32> to vector<1x32xf32>
    %cst_31 = arith.constant dense<0.000000e+00> : vector<16xf32>
    %70 = vector.multi_reduction <add>, %63, %cst_31 [1] : vector<16x32xf32> to vector<16xf32>
    %71 = vector.shape_cast %70 : vector<16xf32> to vector<16x1xf32>
    %cst_32 = arith.constant 3.200000e+01 : f32
    %72 = vector.broadcast %cst_32 : f32 to vector<16x1xf32>
    %73 = arith.divf %71, %72 : vector<16x1xf32>
    %74 = vector.broadcast %73 : vector<16x1xf32> to vector<16x32xf32>
    %75 = arith.subf %63, %74 : vector<16x32xf32>
    %76 = arith.mulf %75, %75 : vector<16x32xf32>
    %cst_33 = arith.constant dense<0.000000e+00> : vector<16xf32>
    %77 = vector.multi_reduction <add>, %76, %cst_33 [1] : vector<16x32xf32> to vector<16xf32>
    %78 = vector.shape_cast %77 : vector<16xf32> to vector<16x1xf32>
    %cst_34 = arith.constant 3.200000e+01 : f32
    %79 = vector.broadcast %cst_34 : f32 to vector<16x1xf32>
    %80 = arith.divf %78, %79 : vector<16x1xf32>
    %81 = vector.broadcast %73 : vector<16x1xf32> to vector<16x32xf32>
    %82 = arith.subf %63, %81 : vector<16x32xf32>
    %cst_35 = arith.constant 9.99999997E-7 : f32
    %83 = vector.broadcast %cst_35 : f32 to vector<16x1xf32>
    %84 = arith.addf %80, %83 : vector<16x1xf32>
    %85 = math.rsqrt %84 : vector<16x1xf32>
    %86 = vector.broadcast %85 : vector<16x1xf32> to vector<16x32xf32>
    %87 = arith.mulf %82, %86 : vector<16x32xf32>
    %88 = vector.broadcast %66 : vector<1x32xf32> to vector<16x32xf32>
    %89 = arith.mulf %87, %88 : vector<16x32xf32>
    %90 = vector.broadcast %69 : vector<1x32xf32> to vector<16x32xf32>
    %91 = arith.addf %89, %90 : vector<16x32xf32>
    %cst_36 = arith.constant 0.000000e+00 : f32
    %92 = vector.broadcast %cst_36 : f32 to vector<16x32xf32>
    %c0_37 = arith.constant 0 : index
    %c0_38 = arith.constant 0 : index
    %c0_39 = arith.constant 0 : index
    %93 = vector.load %arg12[%c0_37, %c0_38, %c0_39] : memref<2x32x16xf32, #tpu.memory_space<vmem>>, vector<1x32x16xf32>
    %94 = vector.shape_cast %93 : vector<1x32x16xf32> to vector<32x16xf32>
    %cst_40 = arith.constant dense<0.000000e+00> : vector<16x16xf32>
    %95 = tpu.matmul %91, %94, %cst_40 {dimension_numbers = #tpu.dot_dimension_numbers<[1], [0], [0], [1], [0, 0, 1, 1], [], []>} : vector<16x32xf32>, vector<32x16xf32>, vector<16x16xf32> -> vector<16x16xf32>
    %c0_41 = arith.constant 0 : index
    %c0_42 = arith.constant 0 : index
    %96 = vector.load %arg13[%c0_41, %c0_42] : memref<2x16xf32, #tpu.memory_space<vmem>>, vector<1x16xf32>
    %97 = vector.shape_cast %96 : vector<1x16xf32> to vector<16xf32>
    %98 = vector.shape_cast %97 : vector<16xf32> to vector<1x16xf32>
    %99 = vector.broadcast %98 : vector<1x16xf32> to vector<16x16xf32>
    %100 = arith.addf %95, %99 : vector<16x16xf32>
    %c0_43 = arith.constant 0 : index
    %c0_44 = arith.constant 0 : index
    %c0_45 = arith.constant 0 : index
    %101 = vector.load %arg14[%c0_43, %c0_44, %c0_45] : memref<2x32x16xf32, #tpu.memory_space<vmem>>, vector<1x32x16xf32>
    %102 = vector.shape_cast %101 : vector<1x32x16xf32> to vector<32x16xf32>
    %cst_46 = arith.constant dense<0.000000e+00> : vector<16x16xf32>
    %103 = tpu.matmul %91, %102, %cst_46 {dimension_numbers = #tpu.dot_dimension_numbers<[1], [0], [0], [1], [0, 0, 1, 1], [], []>} : vector<16x32xf32>, vector<32x16xf32>, vector<16x16xf32> -> vector<16x16xf32>
    %c0_47 = arith.constant 0 : index
    %c0_48 = arith.constant 0 : index
    %104 = vector.load %arg15[%c0_47, %c0_48] : memref<2x16xf32, #tpu.memory_space<vmem>>, vector<1x16xf32>
    %105 = vector.shape_cast %104 : vector<1x16xf32> to vector<16xf32>
    %106 = vector.shape_cast %105 : vector<16xf32> to vector<1x16xf32>
    %107 = vector.broadcast %106 : vector<1x16xf32> to vector<16x16xf32>
    %108 = arith.addf %103, %107 : vector<16x16xf32>
    %c0_49 = arith.constant 0 : index
    %c0_50 = arith.constant 0 : index
    %c0_51 = arith.constant 0 : index
    %109 = vector.load %arg16[%c0_49, %c0_50, %c0_51] : memref<2x32x16xf32, #tpu.memory_space<vmem>>, vector<1x32x16xf32>
    %110 = vector.shape_cast %109 : vector<1x32x16xf32> to vector<32x16xf32>
    %cst_52 = arith.constant dense<0.000000e+00> : vector<16x16xf32>
    %111 = tpu.matmul %91, %110, %cst_52 {dimension_numbers = #tpu.dot_dimension_numbers<[1], [0], [0], [1], [0, 0, 1, 1], [], []>} : vector<16x32xf32>, vector<32x16xf32>, vector<16x16xf32> -> vector<16x16xf32>
    %c0_53 = arith.constant 0 : index
    %c0_54 = arith.constant 0 : index
    %112 = vector.load %arg17[%c0_53, %c0_54] : memref<2x16xf32, #tpu.memory_space<vmem>>, vector<1x16xf32>
    %113 = vector.shape_cast %112 : vector<1x16xf32> to vector<16xf32>
    %114 = vector.shape_cast %113 : vector<16xf32> to vector<1x16xf32>
    %115 = vector.broadcast %114 : vector<1x16xf32> to vector<16x16xf32>
    %116 = arith.addf %111, %115 : vector<16x16xf32>
    %cst_55 = arith.constant dense<0.000000e+00> : vector<16x16xf32>
    %117 = tpu.matmul %100, %108, %cst_55 {dimension_numbers = #tpu.dot_dimension_numbers<[1], [1], [0], [0], [0, 0, 1, 0], [], []>} : vector<16x16xf32>, vector<16x16xf32>, vector<16x16xf32> -> vector<16x16xf32>
    %cst_56 = arith.constant 2.500000e-01 : f32
    %118 = vector.broadcast %cst_56 : f32 to vector<16x16xf32>
    %119 = arith.mulf %117, %118 : vector<16x16xf32>
    %120 = arith.addf %119, %36 : vector<16x16xf32>
    %cst_57 = arith.constant dense<0xFF800000> : vector<16xf32>
    %121 = vector.multi_reduction <maximumf>, %120, %cst_57 [1] : vector<16x16xf32> to vector<16xf32>
    %cst_58 = arith.constant 0xFF800000 : f32
    %122 = vector.broadcast %cst_58 : f32 to vector<16xf32>
    %123 = arith.maximumf %122, %121 : vector<16xf32>
    %124 = vector.shape_cast %123 : vector<16xf32> to vector<16x1xf32>
    %125 = vector.broadcast %124 : vector<16x1xf32> to vector<16x16xf32>
    %126 = arith.subf %120, %125 : vector<16x16xf32>
    %127 = math.exp %126 : vector<16x16xf32>
    %cst_59 = arith.constant dense<0.000000e+00> : vector<16xf32>
    %128 = vector.multi_reduction <add>, %127, %cst_59 [1] : vector<16x16xf32> to vector<16xf32>
    %129 = vector.shape_cast %128 : vector<16xf32> to vector<16x1xf32>
    %130 = vector.broadcast %129 : vector<16x1xf32> to vector<16x16xf32>
    %131 = arith.divf %127, %130 : vector<16x16xf32>
    %cst_60 = arith.constant dense<0.000000e+00> : vector<16x16xf32>
    %132 = tpu.matmul %131, %116, %cst_60 {dimension_numbers = #tpu.dot_dimension_numbers<[1], [0], [0], [1], [0, 0, 1, 1], [], []>} : vector<16x16xf32>, vector<16x16xf32>, vector<16x16xf32> -> vector<16x16xf32>
    %c0_61 = arith.constant 0 : index
    %c0_62 = arith.constant 0 : index
    %c0_63 = arith.constant 0 : index
    %133 = vector.load %arg18[%c0_61, %c0_62, %c0_63] : memref<2x16x32xf32, #tpu.memory_space<vmem>>, vector<1x16x32xf32>
    %134 = vector.shape_cast %133 : vector<1x16x32xf32> to vector<16x32xf32>
    %cst_64 = arith.constant dense<0.000000e+00> : vector<16x32xf32>
    %135 = tpu.matmul %132, %134, %cst_64 {dimension_numbers = #tpu.dot_dimension_numbers<[1], [0], [0], [1], [0, 0, 1, 1], [], []>} : vector<16x16xf32>, vector<16x32xf32>, vector<16x32xf32> -> vector<16x32xf32>
    %136 = arith.addf %92, %135 : vector<16x32xf32>
    %c1 = arith.constant 1 : index
    %c0_65 = arith.constant 0 : index
    %c0_66 = arith.constant 0 : index
    %137 = vector.load %arg12[%c1, %c0_65, %c0_66] : memref<2x32x16xf32, #tpu.memory_space<vmem>>, vector<1x32x16xf32>
    %138 = vector.shape_cast %137 : vector<1x32x16xf32> to vector<32x16xf32>
    %cst_67 = arith.constant dense<0.000000e+00> : vector<16x16xf32>
    %139 = tpu.matmul %91, %138, %cst_67 {dimension_numbers = #tpu.dot_dimension_numbers<[1], [0], [0], [1], [0, 0, 1, 1], [], []>} : vector<16x32xf32>, vector<32x16xf32>, vector<16x16xf32> -> vector<16x16xf32>
    %c1_68 = arith.constant 1 : index
    %c0_69 = arith.constant 0 : index
    %140 = vector.load %arg13[%c1_68, %c0_69] : memref<2x16xf32, #tpu.memory_space<vmem>>, vector<1x16xf32>
    %141 = vector.shape_cast %140 : vector<1x16xf32> to vector<16xf32>
    %142 = vector.shape_cast %141 : vector<16xf32> to vector<1x16xf32>
    %143 = vector.broadcast %142 : vector<1x16xf32> to vector<16x16xf32>
    %144 = arith.addf %139, %143 : vector<16x16xf32>
    %c1_70 = arith.constant 1 : index
    %c0_71 = arith.constant 0 : index
    %c0_72 = arith.constant 0 : index
    %145 = vector.load %arg14[%c1_70, %c0_71, %c0_72] : memref<2x32x16xf32, #tpu.memory_space<vmem>>, vector<1x32x16xf32>
    %146 = vector.shape_cast %145 : vector<1x32x16xf32> to vector<32x16xf32>
    %cst_73 = arith.constant dense<0.000000e+00> : vector<16x16xf32>
    %147 = tpu.matmul %91, %146, %cst_73 {dimension_numbers = #tpu.dot_dimension_numbers<[1], [0], [0], [1], [0, 0, 1, 1], [], []>} : vector<16x32xf32>, vector<32x16xf32>, vector<16x16xf32> -> vector<16x16xf32>
    %c1_74 = arith.constant 1 : index
    %c0_75 = arith.constant 0 : index
    %148 = vector.load %arg15[%c1_74, %c0_75] : memref<2x16xf32, #tpu.memory_space<vmem>>, vector<1x16xf32>
    %149 = vector.shape_cast %148 : vector<1x16xf32> to vector<16xf32>
    %150 = vector.shape_cast %149 : vector<16xf32> to vector<1x16xf32>
    %151 = vector.broadcast %150 : vector<1x16xf32> to vector<16x16xf32>
    %152 = arith.addf %147, %151 : vector<16x16xf32>
    %c1_76 = arith.constant 1 : index
    %c0_77 = arith.constant 0 : index
    %c0_78 = arith.constant 0 : index
    %153 = vector.load %arg16[%c1_76, %c0_77, %c0_78] : memref<2x32x16xf32, #tpu.memory_space<vmem>>, vector<1x32x16xf32>
    %154 = vector.shape_cast %153 : vector<1x32x16xf32> to vector<32x16xf32>
    %cst_79 = arith.constant dense<0.000000e+00> : vector<16x16xf32>
    %155 = tpu.matmul %91, %154, %cst_79 {dimension_numbers = #tpu.dot_dimension_numbers<[1], [0], [0], [1], [0, 0, 1, 1], [], []>} : vector<16x32xf32>, vector<32x16xf32>, vector<16x16xf32> -> vector<16x16xf32>
    %c1_80 = arith.constant 1 : index
    %c0_81 = arith.constant 0 : index
    %156 = vector.load %arg17[%c1_80, %c0_81] : memref<2x16xf32, #tpu.memory_space<vmem>>, vector<1x16xf32>
    %157 = vector.shape_cast %156 : vector<1x16xf32> to vector<16xf32>
    %158 = vector.shape_cast %157 : vector<16xf32> to vector<1x16xf32>
    %159 = vector.broadcast %158 : vector<1x16xf32> to vector<16x16xf32>
    %160 = arith.addf %155, %159 : vector<16x16xf32>
    %cst_82 = arith.constant dense<0.000000e+00> : vector<16x16xf32>
    %161 = tpu.matmul %144, %152, %cst_82 {dimension_numbers = #tpu.dot_dimension_numbers<[1], [1], [0], [0], [0, 0, 1, 0], [], []>} : vector<16x16xf32>, vector<16x16xf32>, vector<16x16xf32> -> vector<16x16xf32>
    %cst_83 = arith.constant 2.500000e-01 : f32
    %162 = vector.broadcast %cst_83 : f32 to vector<16x16xf32>
    %163 = arith.mulf %161, %162 : vector<16x16xf32>
    %164 = arith.addf %163, %36 : vector<16x16xf32>
    %cst_84 = arith.constant dense<0xFF800000> : vector<16xf32>
    %165 = vector.multi_reduction <maximumf>, %164, %cst_84 [1] : vector<16x16xf32> to vector<16xf32>
    %cst_85 = arith.constant 0xFF800000 : f32
    %166 = vector.broadcast %cst_85 : f32 to vector<16xf32>
    %167 = arith.maximumf %166, %165 : vector<16xf32>
    %168 = vector.shape_cast %167 : vector<16xf32> to vector<16x1xf32>
    %169 = vector.broadcast %168 : vector<16x1xf32> to vector<16x16xf32>
    %170 = arith.subf %164, %169 : vector<16x16xf32>
    %171 = math.exp %170 : vector<16x16xf32>
    %cst_86 = arith.constant dense<0.000000e+00> : vector<16xf32>
    %172 = vector.multi_reduction <add>, %171, %cst_86 [1] : vector<16x16xf32> to vector<16xf32>
    %173 = vector.shape_cast %172 : vector<16xf32> to vector<16x1xf32>
    %174 = vector.broadcast %173 : vector<16x1xf32> to vector<16x16xf32>
    %175 = arith.divf %171, %174 : vector<16x16xf32>
    %cst_87 = arith.constant dense<0.000000e+00> : vector<16x16xf32>
    %176 = tpu.matmul %175, %160, %cst_87 {dimension_numbers = #tpu.dot_dimension_numbers<[1], [0], [0], [1], [0, 0, 1, 1], [], []>} : vector<16x16xf32>, vector<16x16xf32>, vector<16x16xf32> -> vector<16x16xf32>
    %c1_88 = arith.constant 1 : index
    %c0_89 = arith.constant 0 : index
    %c0_90 = arith.constant 0 : index
    %177 = vector.load %arg18[%c1_88, %c0_89, %c0_90] : memref<2x16x32xf32, #tpu.memory_space<vmem>>, vector<1x16x32xf32>
    %178 = vector.shape_cast %177 : vector<1x16x32xf32> to vector<16x32xf32>
    %cst_91 = arith.constant dense<0.000000e+00> : vector<16x32xf32>
    %179 = tpu.matmul %176, %178, %cst_91 {dimension_numbers = #tpu.dot_dimension_numbers<[1], [0], [0], [1], [0, 0, 1, 1], [], []>} : vector<16x16xf32>, vector<16x32xf32>, vector<16x32xf32> -> vector<16x32xf32>
    %180 = arith.addf %136, %179 : vector<16x32xf32>
    %181 = arith.addf %63, %180 : vector<16x32xf32>
    %c0_92 = arith.constant 0 : index
    %c0_93 = arith.constant 0 : index
    %182 = vector.load %arg19[%c0_92, %c0_93] : memref<1x32xf32, #tpu.memory_space<vmem>>, vector<1x32xf32>
    %183 = vector.shape_cast %182 : vector<1x32xf32> to vector<32xf32>
    %184 = vector.shape_cast %183 : vector<32xf32> to vector<1x32xf32>
    %185 = vector.broadcast %184 : vector<1x32xf32> to vector<16x32xf32>
    %186 = arith.addf %181, %185 : vector<16x32xf32>
    %c0_94 = arith.constant 0 : index
    %c0_95 = arith.constant 0 : index
    %187 = vector.load %arg20[%c0_94, %c0_95] : memref<1x32xf32, #tpu.memory_space<vmem>>, vector<1x32xf32>
    %188 = vector.shape_cast %187 : vector<1x32xf32> to vector<32xf32>
    %189 = vector.shape_cast %188 : vector<32xf32> to vector<1x32xf32>
    %c0_96 = arith.constant 0 : index
    %c0_97 = arith.constant 0 : index
    %190 = vector.load %arg21[%c0_96, %c0_97] : memref<1x32xf32, #tpu.memory_space<vmem>>, vector<1x32xf32>
    %191 = vector.shape_cast %190 : vector<1x32xf32> to vector<32xf32>
    %192 = vector.shape_cast %191 : vector<32xf32> to vector<1x32xf32>
    %cst_98 = arith.constant dense<0.000000e+00> : vector<16xf32>
    %193 = vector.multi_reduction <add>, %186, %cst_98 [1] : vector<16x32xf32> to vector<16xf32>
    %194 = vector.shape_cast %193 : vector<16xf32> to vector<16x1xf32>
    %cst_99 = arith.constant 3.200000e+01 : f32
    %195 = vector.broadcast %cst_99 : f32 to vector<16x1xf32>
    %196 = arith.divf %194, %195 : vector<16x1xf32>
    %197 = vector.broadcast %196 : vector<16x1xf32> to vector<16x32xf32>
    %198 = arith.subf %186, %197 : vector<16x32xf32>
    %199 = arith.mulf %198, %198 : vector<16x32xf32>
    %cst_100 = arith.constant dense<0.000000e+00> : vector<16xf32>
    %200 = vector.multi_reduction <add>, %199, %cst_100 [1] : vector<16x32xf32> to vector<16xf32>
    %201 = vector.shape_cast %200 : vector<16xf32> to vector<16x1xf32>
    %cst_101 = arith.constant 3.200000e+01 : f32
    %202 = vector.broadcast %cst_101 : f32 to vector<16x1xf32>
    %203 = arith.divf %201, %202 : vector<16x1xf32>
    %204 = vector.broadcast %196 : vector<16x1xf32> to vector<16x32xf32>
    %205 = arith.subf %186, %204 : vector<16x32xf32>
    %cst_102 = arith.constant 9.99999997E-7 : f32
    %206 = vector.broadcast %cst_102 : f32 to vector<16x1xf32>
    %207 = arith.addf %203, %206 : vector<16x1xf32>
    %208 = math.rsqrt %207 : vector<16x1xf32>
    %209 = vector.broadcast %208 : vector<16x1xf32> to vector<16x32xf32>
    %210 = arith.mulf %205, %209 : vector<16x32xf32>
    %211 = vector.broadcast %189 : vector<1x32xf32> to vector<16x32xf32>
    %212 = arith.mulf %210, %211 : vector<16x32xf32>
    %213 = vector.broadcast %192 : vector<1x32xf32> to vector<16x32xf32>
    %214 = arith.addf %212, %213 : vector<16x32xf32>
    %c0_103 = arith.constant 0 : index
    %c0_104 = arith.constant 0 : index
    %c0_105 = arith.constant 0 : index
    %215 = vector.load %arg22[%c0_103, %c0_104, %c0_105] : memref<1x32x128xf32, #tpu.memory_space<vmem>>, vector<1x32x128xf32>
    %216 = vector.shape_cast %215 : vector<1x32x128xf32> to vector<32x128xf32>
    %cst_106 = arith.constant dense<0.000000e+00> : vector<16x128xf32>
    %217 = tpu.matmul %214, %216, %cst_106 {dimension_numbers = #tpu.dot_dimension_numbers<[1], [0], [0], [1], [0, 0, 1, 1], [], []>} : vector<16x32xf32>, vector<32x128xf32>, vector<16x128xf32> -> vector<16x128xf32>
    %c0_107 = arith.constant 0 : index
    %c0_108 = arith.constant 0 : index
    %218 = vector.load %arg23[%c0_107, %c0_108] : memref<1x128xf32, #tpu.memory_space<vmem>>, vector<1x128xf32>
    %219 = vector.shape_cast %218 : vector<1x128xf32> to vector<128xf32>
    %220 = vector.shape_cast %219 : vector<128xf32> to vector<1x128xf32>
    %221 = vector.broadcast %220 : vector<1x128xf32> to vector<16x128xf32>
    %222 = arith.addf %217, %221 : vector<16x128xf32>
    %223 = arith.mulf %222, %222 : vector<16x128xf32>
    %224 = arith.mulf %222, %223 : vector<16x128xf32>
    %cst_109 = arith.constant 4.471500e-02 : f32
    %225 = vector.broadcast %cst_109 : f32 to vector<16x128xf32>
    %226 = arith.mulf %225, %224 : vector<16x128xf32>
    %227 = arith.addf %222, %226 : vector<16x128xf32>
    %cst_110 = arith.constant 0.797884583 : f32
    %228 = vector.broadcast %cst_110 : f32 to vector<16x128xf32>
    %229 = arith.mulf %228, %227 : vector<16x128xf32>
    %230 = math.tanh %229 : vector<16x128xf32>
    %cst_111 = arith.constant 1.000000e+00 : f32
    %231 = vector.broadcast %cst_111 : f32 to vector<16x128xf32>
    %232 = arith.addf %231, %230 : vector<16x128xf32>
    %cst_112 = arith.constant 5.000000e-01 : f32
    %233 = vector.broadcast %cst_112 : f32 to vector<16x128xf32>
    %234 = arith.mulf %233, %232 : vector<16x128xf32>
    %235 = arith.mulf %222, %234 : vector<16x128xf32>
    %c0_113 = arith.constant 0 : index
    %c0_114 = arith.constant 0 : index
    %c0_115 = arith.constant 0 : index
    %236 = vector.load %arg24[%c0_113, %c0_114, %c0_115] : memref<1x128x32xf32, #tpu.memory_space<vmem>>, vector<1x128x32xf32>
    %237 = vector.shape_cast %236 : vector<1x128x32xf32> to vector<128x32xf32>
    %cst_116 = arith.constant dense<0.000000e+00> : vector<16x32xf32>
    %238 = tpu.matmul %235, %237, %cst_116 {dimension_numbers = #tpu.dot_dimension_numbers<[1], [0], [0], [1], [0, 0, 1, 1], [], []>} : vector<16x128xf32>, vector<128x32xf32>, vector<16x32xf32> -> vector<16x32xf32>
    %c0_117 = arith.constant 0 : index
    %c0_118 = arith.constant 0 : index
    %239 = vector.load %arg25[%c0_117, %c0_118] : memref<1x32xf32, #tpu.memory_space<vmem>>, vector<1x32xf32>
    %240 = vector.shape_cast %239 : vector<1x32xf32> to vector<32xf32>
    %241 = vector.shape_cast %240 : vector<32xf32> to vector<1x32xf32>
    %242 = vector.broadcast %241 : vector<1x32xf32> to vector<16x32xf32>
    %243 = arith.addf %238, %242 : vector<16x32xf32>
    %244 = arith.addf %186, %243 : vector<16x32xf32>
    %245 = arith.mulf %244, %14 : vector<16x32xf32>
    %cst_119 = arith.constant dense<0.000000e+00> : vector<16xf32>
    %246 = vector.multi_reduction <add>, %245, %cst_119 [1] : vector<16x32xf32> to vector<16xf32>
    %247 = vector.shape_cast %246 : vector<16xf32> to vector<16x1xf32>
    %248 = arith.mulf %244, %21 : vector<16x32xf32>
    %cst_120 = arith.constant dense<0.000000e+00> : vector<16xf32>
    %249 = vector.multi_reduction <add>, %248, %cst_120 [1] : vector<16x32xf32> to vector<16xf32>
    %250 = vector.shape_cast %249 : vector<16xf32> to vector<16x1xf32>
    %c0_121 = arith.constant 0 : index
    %c0_122 = arith.constant 0 : index
    %251 = vector.load %arg4[%c0_121, %c0_122] : memref<16x1xf32, #tpu.memory_space<vmem>>, vector<16x1xf32>
    %cst_123 = arith.constant 0.000000e+00 : f32
    %252 = vector.broadcast %cst_123 : f32 to vector<16x1xf32>
    %253 = arith.cmpf one, %251, %252 : vector<16x1xf32>
    %254 = arith.extui %253 : vector<16x1xi1> to vector<16x1xi32>
    %255 = arith.sitofp %254 : vector<16x1xi32> to vector<16x1xf32>
    %cst_124 = arith.constant 0.000000e+00 : f32
    %256 = vector.broadcast %cst_124 : f32 to vector<16x1xf32>
    %257 = arith.subf %256, %247 : vector<16x1xf32>
    %cst_125 = arith.constant 0.000000e+00 : f32
    %258 = vector.broadcast %cst_125 : f32 to vector<16x1xf32>
    %259 = arith.maximumf %257, %258 : vector<16x1xf32>
    %260 = vector.broadcast %cst_125 : f32 to vector<16x1xf32>
    %261 = arith.subf %257, %260 : vector<16x1xf32>
    %262 = arith.cmpf one, %261, %261 : vector<16x1xf32>
    %263 = vector.broadcast %cst_125 : f32 to vector<16x1xf32>
    %264 = arith.addf %257, %263 : vector<16x1xf32>
    %265 = math.absf %261 : vector<16x1xf32>
    %cst_126 = arith.constant 0.000000e+00 : f32
    %266 = vector.broadcast %cst_126 : f32 to vector<16x1xf32>
    %267 = arith.subf %266, %265 : vector<16x1xf32>
    %268 = math.exp %267 : vector<16x1xf32>
    %269 = math.log1p %268 : vector<16x1xf32>
    %270 = arith.addf %259, %269 : vector<16x1xf32>
    %271 = arith.select %262, %264, %270 : vector<16x1xi1>, vector<16x1xf32>
    %cst_127 = arith.constant 0.000000e+00 : f32
    %272 = vector.broadcast %cst_127 : f32 to vector<16x1xf32>
    %273 = arith.maximumf %250, %272 : vector<16x1xf32>
    %274 = vector.broadcast %cst_127 : f32 to vector<16x1xf32>
    %275 = arith.subf %250, %274 : vector<16x1xf32>
    %276 = arith.cmpf one, %275, %275 : vector<16x1xf32>
    %277 = vector.broadcast %cst_127 : f32 to vector<16x1xf32>
    %278 = arith.addf %250, %277 : vector<16x1xf32>
    %279 = math.absf %275 : vector<16x1xf32>
    %cst_128 = arith.constant 0.000000e+00 : f32
    %280 = vector.broadcast %cst_128 : f32 to vector<16x1xf32>
    %281 = arith.subf %280, %279 : vector<16x1xf32>
    %282 = math.exp %281 : vector<16x1xf32>
    %283 = math.log1p %282 : vector<16x1xf32>
    %284 = arith.addf %273, %283 : vector<16x1xf32>
    %285 = arith.select %276, %278, %284 : vector<16x1xi1>, vector<16x1xf32>
    %286 = arith.addf %271, %285 : vector<16x1xf32>
    %287 = arith.mulf %286, %255 : vector<16x1xf32>
    %288 = vector.shape_cast %287 : vector<16x1xf32> to vector<1x16x1xf32>
    %cst_129 = arith.constant dense<0.000000e+00> : vector<1xf32>
    %289 = vector.multi_reduction <add>, %288, %cst_129 [1, 2] : vector<1x16x1xf32> to vector<1xf32>
    %290 = vector.shape_cast %289 : vector<1xf32> to vector<1x1x1xf32>
    %291 = vector.extract %290[0, 0, 0] : f32 from vector<1x1x1xf32>
    %292 = vector.broadcast %291 : f32 to vector<1x1xf32>
    %293 = vector.shape_cast %255 : vector<16x1xf32> to vector<1x16x1xf32>
    %cst_130 = arith.constant dense<0.000000e+00> : vector<1xf32>
    %294 = vector.multi_reduction <add>, %293, %cst_130 [1, 2] : vector<1x16x1xf32> to vector<1xf32>
    %295 = vector.shape_cast %294 : vector<1xf32> to vector<1x1x1xf32>
    %296 = vector.extract %295[0, 0, 0] : f32 from vector<1x1x1xf32>
    %297 = vector.broadcast %296 : f32 to vector<1x1xf32>
    %298 = tpu.reciprocal %297 {approx = true} : vector<1x1xf32> -> vector<1x1xf32>
    %299 = arith.mulf %292, %298 : vector<1x1xf32>
    %c0_131 = arith.constant 0 : index
    %c0_132 = arith.constant 0 : index
    %300 = vector.load %arg26[%c0_131, %c0_132] : memref<1x1xf32, #tpu.memory_space<vmem>>, vector<1x1xf32>
    tpu.vector_store %arg26[%c0_131, %c0_132], %299 {strides = array<i32>} : memref<1x1xf32, #tpu.memory_space<vmem>>, vector<1x1xf32>,
    return
  }
}

</mosaic_0001>

<llo_original>
// kernel: model_forward.1
$region0: #{model_forward.1}
  #allocation0 [shape = 'u32[]', space=smem, size = 0x4, offset = 0x4, fixed_abs, tag = 'smem constant byte address 0x4 - core index']
  #allocation1 [shape = 'u32[72,128]{1,0:T(1,128)}', space=vmem, size = 0x9000, scoped, tag = 'internal scratch']
  %s0 = inlined_call_operand.vmem [shape: s32[16,1], index: 0, kind: input, shape index: {}]
  %s1 = inlined_call_operand.vmem [shape: s32[16,1], index: 1, kind: input, shape index: {}]
  %s2 = inlined_call_operand.vmem [shape: s32[16,1], index: 2, kind: input, shape index: {}]
  %s3 = inlined_call_operand.vmem [shape: f32[1,16], index: 3, kind: input, shape index: {}]
  %s4 = inlined_call_operand.vmem [shape: f32[16,1], index: 4, kind: input, shape index: {}]
  %s5 = inlined_call_operand.vmem [shape: s32[16,1], index: 5, kind: input, shape index: {}]
  %s6 = inlined_call_operand.vmem [shape: f32[51,32], index: 6, kind: input, shape index: {}]
  %s7 = inlined_call_operand.vmem [shape: f32[8,32], index: 7, kind: input, shape index: {}]
  %s8 = inlined_call_operand.vmem [shape: f32[1,32], index: 8, kind: input, shape index: {}]
  %s9 = inlined_call_operand.vmem [shape: f32[1,32], index: 9, kind: input, shape index: {}]
  %s10 = inlined_call_operand.vmem [shape: f32[1,32], index: 10, kind: input, shape index: {}]
  %s11 = inlined_call_operand.vmem [shape: f32[1,32], index: 11, kind: input, shape index: {}]
  %s12 = inlined_call_operand.vmem [shape: f32[2,32,16], index: 12, kind: input, shape index: {}]
  %s13 = inlined_call_operand.vmem [shape: f32[2,16], index: 13, kind: input, shape index: {}]
  %s14 = inlined_call_operand.vmem [shape: f32[2,32,16], index: 14, kind: input, shape index: {}]
  %s15 = inlined_call_operand.vmem [shape: f32[2,16], index: 15, kind: input, shape index: {}]
  %s16 = inlined_call_operand.vmem [shape: f32[2,32,16], index: 16, kind: input, shape index: {}]
  %s17 = inlined_call_operand.vmem [shape: f32[2,16], index: 17, kind: input, shape index: {}]
  %s18 = inlined_call_operand.vmem [shape: f32[2,16,32], index: 18, kind: input, shape index: {}]
  %s19 = inlined_call_operand.vmem [shape: f32[1,32], index: 19, kind: input, shape index: {}]
  %s20 = inlined_call_operand.vmem [shape: f32[1,32], index: 20, kind: input, shape index: {}]
  %s21 = inlined_call_operand.vmem [shape: f32[1,32], index: 21, kind: input, shape index: {}]
  %s22 = inlined_call_operand.vmem [shape: f32[1,32,128], index: 22, kind: input, shape index: {}]
  %s23 = inlined_call_operand.vmem [shape: f32[1,128], index: 23, kind: input, shape index: {}]
  %s24 = inlined_call_operand.vmem [shape: f32[1,128,32], index: 24, kind: input, shape index: {}]
  %s25 = inlined_call_operand.vmem [shape: f32[1,32], index: 25, kind: input, shape index: {}]
  %s26 = inlined_call_operand.hbm [shape: f32[1,1], index: 26, kind: output, shape index: {}]
  %s27 = sld [smem:[#allocation0]]
  $region114: #{model_forward.1} parent=0
    _
  %s29 = ssub.s32 1, %s27
  %s30 = scalar_select 0, %s29, %s27
  $region1: #{model_forward.1} parent=0
    #allocation2 [shape = 'u8[512]{0}', space=vmem, size = 0x400, scoped, tag = 'output window, operand 0, single buffered']
    #allocation3 [shape = 's32[1]{0}', space=sflag, size = 0x4, scoped, tag = 'scoped memory for model_forward.1']
    %31 = vsyncpa [#allocation3], 0
    // Predicated region
    $region2: #{model_forward.1} parent=1 // pred_check
      _
    $region3: #{model_forward.1} parent=1 // pred_check_branch
      %33 = sbr.rel (0) target = $region5
    $region4: #{model_forward.1} parent=1 // pred_region
      _
    $region5: #{model_forward.1} parent=1 // pred_fallthru
      _
    // Predicated region
    $region6: #{model_forward.1} parent=1 // pred_check
      _
    $region7: #{model_forward.1} parent=1 // pred_check_branch
      %35 = sbr.rel (0) target = $region9
    $region8: #{model_forward.1} parent=1 // pred_region
      _
    $region9: #{model_forward.1} parent=1 // pred_fallthru
      _
    // Predicated region
    $region10: #{model_forward.1} parent=1 // pred_check
      _
    $region11: #{model_forward.1} parent=1 // pred_check_branch
      %37 = sbr.rel (0) target = $region13
    $region12: #{model_forward.1} parent=1 // pred_region
      _
    $region13: #{model_forward.1} parent=1 // pred_fallthru
      _
    // Predicated region
    $region14: #{model_forward.1} parent=1 // pred_check
      _
    $region15: #{model_forward.1} parent=1 // pred_check_branch
      %39 = sbr.rel (0) target = $region17
    $region16: #{model_forward.1} parent=1 // pred_region
      _
    $region17: #{model_forward.1} parent=1 // pred_fallthru
      _
    // Predicated region
    $region18: #{model_forward.1} parent=1 // pred_check
      _
    $region19: #{model_forward.1} parent=1 // pred_check_branch
      %41 = sbr.rel (0) target = $region21
    $region20: #{model_forward.1} parent=1 // pred_region
      _
    $region21: #{model_forward.1} parent=1 // pred_fallthru
      _
    // Predicated region
    $region22: #{model_forward.1} parent=1 // pred_check
      _
    $region23: #{model_forward.1} parent=1 // pred_check_branch
      %43 = sbr.rel (0) target = $region25
    $region24: #{model_forward.1} parent=1 // pred_region
      _
    $region25: #{model_forward.1} parent=1 // pred_fallthru
      _
    // Predicated region
    $region26: #{model_forward.1} parent=1 // pred_check
      _
    $region27: #{model_forward.1} parent=1 // pred_check_branch
      %45 = sbr.rel (0) target = $region29
    $region28: #{model_forward.1} parent=1 // pred_region
      _
    $region29: #{model_forward.1} parent=1 // pred_fallthru
      _
    // Predicated region
    $region30: #{model_forward.1} parent=1 // pred_check
      _
    $region31: #{model_forward.1} parent=1 // pred_check_branch
      %47 = sbr.rel (0) target = $region33
    $region32: #{model_forward.1} parent=1 // pred_region
      _
    $region33: #{model_forward.1} parent=1 // pred_fallthru
      _
    // Predicated region
    $region34: #{model_forward.1} parent=1 // pred_check
      _
    $region35: #{model_forward.1} parent=1 // pred_check_branch
      %49 = sbr.rel (0) target = $region37
    $region36: #{model_forward.1} parent=1 // pred_region
      _
    $region37: #{model_forward.1} parent=1 // pred_fallthru
      _
    // Predicated region
    $region38: #{model_forward.1} parent=1 // pred_check
      _
    $region39: #{model_forward.1} parent=1 // pred_check_branch
      %51 = sbr.rel (0) target = $region41
    $region40: #{model_forward.1} parent=1 // pred_region
      _
    $region41: #{model_forward.1} parent=1 // pred_fallthru
      _
    // Predicated region
    $region42: #{model_forward.1} parent=1 // pred_check
      _
    $region43: #{model_forward.1} parent=1 // pred_check_branch
      %53 = sbr.rel (0) target = $region45
    $region44: #{model_forward.1} parent=1 // pred_region
      _
    $region45: #{model_forward.1} parent=1 // pred_fallthru
      _
    // Predicated region
    $region46: #{model_forward.1} parent=1 // pred_check
      _
    $region47: #{model_forward.1} parent=1 // pred_check_branch
      %55 = sbr.rel (0) target = $region49
    $region48: #{model_forward.1} parent=1 // pred_region
      _
    $region49: #{model_forward.1} parent=1 // pred_fallthru
      _
    // Predicated region
    $region50: #{model_forward.1} parent=1 // pred_check
      _
    $region51: #{model_forward.1} parent=1 // pred_check_branch
      %57 = sbr.rel (0) target = $region53
    $region52: #{model_forward.1} parent=1 // pred_region
      _
    $region53: #{model_forward.1} parent=1 // pred_fallthru
      _
    // Predicated region
    $region54: #{model_forward.1} parent=1 // pred_check
      _
    $region55: #{model_forward.1} parent=1 // pred_check_branch
      %59 = sbr.rel (0) target = $region57
    $region56: #{model_forward.1} parent=1 // pred_region
      _
    $region57: #{model_forward.1} parent=1 // pred_fallthru
      _
    // Predicated region
    $region58: #{model_forward.1} parent=1 // pred_check
      _
    $region59: #{model_forward.1} parent=1 // pred_check_branch
      %61 = sbr.rel (0) target = $region61
    $region60: #{model_forward.1} parent=1 // pred_region
      _
    $region61: #{model_forward.1} parent=1 // pred_fallthru
      _
    // Predicated region
    $region62: #{model_forward.1} parent=1 // pred_check
      _
    $region63: #{model_forward.1} parent=1 // pred_check_branch
      %63 = sbr.rel (0) target = $region65
    $region64: #{model_forward.1} parent=1 // pred_region
      _
    $region65: #{model_forward.1} parent=1 // pred_fallthru
      _
    // Predicated region
    $region66: #{model_forward.1} parent=1 // pred_check
      _
    $region67: #{model_forward.1} parent=1 // pred_check_branch
      %65 = sbr.rel (0) target = $region69
    $region68: #{model_forward.1} parent=1 // pred_region
      _
    $region69: #{model_forward.1} parent=1 // pred_fallthru
      _
    // Predicated region
    $region70: #{model_forward.1} parent=1 // pred_check
      _
    $region71: #{model_forward.1} parent=1 // pred_check_branch
      %67 = sbr.rel (0) target = $region73
    $region72: #{model_forward.1} parent=1 // pred_region
      _
    $region73: #{model_forward.1} parent=1 // pred_fallthru
      _
    // Predicated region
    $region74: #{model_forward.1} parent=1 // pred_check
      _
    $region75: #{model_forward.1} parent=1 // pred_check_branch
      %69 = sbr.rel (0) target = $region77
    $region76: #{model_forward.1} parent=1 // pred_region
      _
    $region77: #{model_forward.1} parent=1 // pred_fallthru
      _
    // Predicated region
    $region78: #{model_forward.1} parent=1 // pred_check
      _
    $region79: #{model_forward.1} parent=1 // pred_check_branch
      %71 = sbr.rel (0) target = $region81
    $region80: #{model_forward.1} parent=1 // pred_region
      _
    $region81: #{model_forward.1} parent=1 // pred_fallthru
      _
    // Predicated region
    $region82: #{model_forward.1} parent=1 // pred_check
      _
    $region83: #{model_forward.1} parent=1 // pred_check_branch
      %73 = sbr.rel (0) target = $region85
    $region84: #{model_forward.1} parent=1 // pred_region
      _
    $region85: #{model_forward.1} parent=1 // pred_fallthru
      _
    // Predicated region
    $region86: #{model_forward.1} parent=1 // pred_check
      _
    $region87: #{model_forward.1} parent=1 // pred_check_branch
      %75 = sbr.rel (0) target = $region89
    $region88: #{model_forward.1} parent=1 // pred_region
      _
    $region89: #{model_forward.1} parent=1 // pred_fallthru
      _
    // Predicated region
    $region90: #{model_forward.1} parent=1 // pred_check
      _
    $region91: #{model_forward.1} parent=1 // pred_check_branch
      %77 = sbr.rel (0) target = $region93
    $region92: #{model_forward.1} parent=1 // pred_region
      _
    $region93: #{model_forward.1} parent=1 // pred_fallthru
      _
    // Predicated region
    $region94: #{model_forward.1} parent=1 // pred_check
      _
    $region95: #{model_forward.1} parent=1 // pred_check_branch
      %79 = sbr.rel (0) target = $region97
    $region96: #{model_forward.1} parent=1 // pred_region
      _
    $region97: #{model_forward.1} parent=1 // pred_fallthru
      _
    // Predicated region
    $region98: #{model_forward.1} parent=1 // pred_check
      _
    $region99: #{model_forward.1} parent=1 // pred_check_branch
      %81 = sbr.rel (0) target = $region101
    $region100: #{model_forward.1} parent=1 // pred_region
      _
    $region101: #{model_forward.1} parent=1 // pred_fallthru
      _
    // Predicated region
    $region102: #{model_forward.1} parent=1 // pred_check
      _
    $region103: #{model_forward.1} parent=1 // pred_check_branch
      %83 = sbr.rel (0) target = $region105
    $region104: #{model_forward.1} parent=1 // pred_region
      _
    $region105: #{model_forward.1} parent=1 // pred_fallthru
      _
    %v84 = vld [vmem:[%s6] sm:$0xff]
    %v85 = vld [vmem:[%s6 + $0x8] sm:$0xff]
    %v86 = vld [vmem:[%s6 + $0x10] sm:$0xff]
    %v87 = vld [vmem:[%s6 + $0x18] sm:$0xff]
    %v88 = vld [vmem:[%s6 + $0x20] sm:$0xff]
    %v89 = vld [vmem:[%s6 + $0x28] sm:$0xff]
    %v90 = vld [vmem:[%s6 + $0x30] sm:$0x7]
    %v91 = vld [vmem:[%s0] sm:$0xff]
    %v92 = vld [vmem:[%s0 + $0x8] sm:$0xff]
    %v93 = vlaneseq
    %v94 = vand.u32 %v93, 127
    %95 = vset.pattern.permute.xlu0 0
    %96 = vperm.xlu0 %95, %v91
    %v97 = vpop.permute.xlu0 %96
    %98 = vset.pattern.permute.xlu0 0
    %99 = vperm.xlu0 %98, %v92
    %v100 = vpop.permute.xlu0 %99
    %vm101 = vcmp.eq.s32.totalorder %v94, %v97
    %vm102 = vcmp.eq.s32.totalorder %v94, %v100
    %v103 = vsel %vm101, 1, 0
    %v104 = vsel %vm102, 1, 0
    %v105 = vcvt.s32.f32 %v103
    %v106 = vcvt.s32.f32 %v104
    %v107 = vld [vmem:[%s1] sm:$0xff]
    %v108 = vld [vmem:[%s1 + $0x8] sm:$0xff]
    %109 = vset.pattern.permute.xlu0 0
    %110 = vperm.xlu0 %109, %v107
    %v111 = vpop.permute.xlu0 %110
    %112 = vset.pattern.permute.xlu0 0
    %113 = vperm.xlu0 %112, %v108
    %v114 = vpop.permute.xlu0 %113
    %vm115 = vcmp.eq.s32.totalorder %v94, %v111
    %vm116 = vcmp.eq.s32.totalorder %v94, %v114
    %v117 = vsel %vm115, 1, 0
    %v118 = vsel %vm116, 1, 0
    %v119 = vcvt.s32.f32 %v117
    %v120 = vcvt.s32.f32 %v118
    %vm121 = vcmask 416768
    %v123 = vsel %vm121, %v119, 0
    %v126 = vsel %vm121, %v120, 0
    %vm128 = vcmask 1042432
    %v130 = vsel %vm128, %v90, 0
    %132 = vmatpush.msra.mxu0 0.0
    %133 = vmatpush.msra.mxu0 0.0
    %134 = vmatpush.msra.mxu0 0.0
    %135 = vmatpush.msra.mxu0 0.0
    %136 = vmatpush.msra.mxu0 0.0
    %137 = vmatpush.msra.mxu0 0.0
    %138 = vmatpush.msra.mxu0 0.0
    %139 = vmatpush.msra.mxu0 0.0
    %140 = vmatpush.msra.mxu0 0.0
    %141 = vmatpush.msra.mxu0 %v130
    %142 = vmatpush.msra.mxu0 %v89
    %143 = vmatpush.msra.mxu0 %v88
    %144 = vmatpush.msra.mxu0 %v87
    %145 = vmatpush.msra.mxu0 %v86
    %146 = vmatpush.msra.mxu0 %v85
    %147 = vmatpush.msra.mxu0 %v84
    %148 = vmatmul.f32.gmra.mxu0 %v123
    %v149 = vpop.f32.mrf.mxu0
    %v150 = vadd.f32 0.0, %v149
    %151 = vmatmul.f32.gmra.mxu0 %v126
    %v152 = vpop.f32.mrf.mxu0
    %v153 = vadd.f32 0.0, %v152
    %154 = vdwg.mxu0
    %v155 = vld [vmem:[%s2] sm:$0xff]
    %v156 = vld [vmem:[%s2 + $0x8] sm:$0xff]
    %157 = vset.pattern.permute.xlu0 0
    %158 = vperm.xlu0 %157, %v155
    %v159 = vpop.permute.xlu0 %158
    %160 = vset.pattern.permute.xlu0 0
    %161 = vperm.xlu0 %160, %v156
    %v162 = vpop.permute.xlu0 %161
    %vm163 = vcmp.eq.s32.totalorder %v94, %v159
    %vm164 = vcmp.eq.s32.totalorder %v94, %v162
    %v165 = vsel %vm163, 1, 0
    %v166 = vsel %vm164, 1, 0
    %v167 = vcvt.s32.f32 %v165
    %v168 = vcvt.s32.f32 %v166
    %v170 = vsel %vm121, %v167, 0
    %v173 = vsel %vm121, %v168, 0
    %175 = vmatpush.msra.mxu0 0.0
    %176 = vmatpush.msra.mxu0 0.0
    %177 = vmatpush.msra.mxu0 0.0
    %178 = vmatpush.msra.mxu0 0.0
    %179 = vmatpush.msra.mxu0 0.0
    %180 = vmatpush.msra.mxu0 0.0
    %181 = vmatpush.msra.mxu0 0.0
    %182 = vmatpush.msra.mxu0 0.0
    %183 = vmatpush.msra.mxu0 0.0
    %184 = vmatpush.msra.mxu0 %v130
    %185 = vmatpush.msra.mxu0 %v89
    %186 = vmatpush.msra.mxu0 %v88
    %187 = vmatpush.msra.mxu0 %v87
    %188 = vmatpush.msra.mxu0 %v86
    %189 = vmatpush.msra.mxu0 %v85
    %190 = vmatpush.msra.mxu0 %v84
    %191 = vmatmul.f32.gmra.mxu0 %v170
    %v192 = vpop.f32.mrf.mxu0
    %v193 = vadd.f32 0.0, %v192
    %194 = vmatmul.f32.gmra.mxu0 %v173
    %v195 = vpop.f32.mrf.mxu0
    %v196 = vadd.f32 0.0, %v195
    %197 = vdwg.mxu0
    %v198 = vlaneseq
    %v199 = vshrl.u32 %v198, 7
    %v200 = vadd.s32 %v199, 8
    %v201 = vld [vmem:[%s5] sm:$0xff]
    %v202 = vld [vmem:[%s5 + $0x8] sm:$0xff]
    %v203 = vld [vmem:[%s3] sm:$0x1]
    %vm204 = vcmp.ne.f32.partialorder %v203, 0.0
    %vm205 = vcmp.le.s32.totalorder %v94, %v199
    %vm206 = vcmp.le.s32.totalorder %v94, %v200
    %207 = vset.pattern.permute.xlu0 0
    %208 = vperm.xlu0 %207, %v201
    %v209 = vpop.permute.xlu0 %208
    %210 = vset.pattern.permute.xlu0 0
    %211 = vperm.xlu0 %210, %v202
    %v212 = vpop.permute.xlu0 %211
    %vm213 = vcmp.ge.s32.totalorder %v94, %v209
    %vm214 = vcmp.ge.s32.totalorder %v94, %v212
    %vm215 = vmand %vm205, %vm213
    %vm216 = vmand %vm206, %vm214
    %v217 = vsel %vm204, 1, 0
    %v218 = vperm.slane %v217, 0
    %vm219 = vcmp.eq.s32.totalorder %v218, 1
    %vm220 = vmand %vm215, %vm219
    %vm221 = vmand %vm216, %vm219
    %v222 = vsel %vm220, 0.0, -1e+09
    %v223 = vsel %vm221, 0.0, -1e+09
    %v224 = vld [vmem:[%s7] sm:$0xff]
    %v226 = vsel %vm121, %v105, 0
    %v229 = vsel %vm121, %v106, 0
    %231 = vmatpush.msra.mxu0 0.0
    %232 = vmatpush.msra.mxu0 0.0
    %233 = vmatpush.msra.mxu0 0.0
    %234 = vmatpush.msra.mxu0 0.0
    %235 = vmatpush.msra.mxu0 0.0
    %236 = vmatpush.msra.mxu0 0.0
    %237 = vmatpush.msra.mxu0 0.0
    %238 = vmatpush.msra.mxu0 0.0
    %239 = vmatpush.msra.mxu0 0.0
    %240 = vmatpush.msra.mxu0 %v130
    %241 = vmatpush.msra.mxu0 %v89
    %242 = vmatpush.msra.mxu0 %v88
    %243 = vmatpush.msra.mxu0 %v87
    %244 = vmatpush.msra.mxu0 %v86
    %245 = vmatpush.msra.mxu0 %v85
    %246 = vmatpush.msra.mxu0 %v84
    %247 = vmatmul.f32.gmra.mxu0 %v226
    %v248 = vpop.f32.mrf.mxu0
    %v249 = vadd.f32 %v224, %v248
    %250 = vmatmul.f32.gmra.mxu0 %v229
    %v251 = vpop.f32.mrf.mxu0
    %v252 = vadd.f32 %v224, %v251
    %253 = vdwg.mxu0
    %v254 = vld [vmem:[%s8] sm:$0x1]
    %v255 = vld [vmem:[%s9] sm:$0x1]
    %vm256 = vcmask 261120
    %v257 = vsel %vm256, %v249, 0.0
    %258 = vadd.xlane.f32.xlu0 %v257
    %v259 = vpop.xlane.xlu0 %258
    %v260 = vsel %vm256, %v252, 0.0
    %261 = vadd.xlane.f32.xlu0 %v260
    %v262 = vpop.xlane.xlu0 %261
    %v263 = vrcp.pop 32.0
    %v264 = vmul.f32 32.0, %v263
    %v265 = vsub.f32 1.0, %v264
    %v266 = vmul.f32 %v263, %v265
    %v267 = vadd.f32 %v263, %v266
    %vm268 = vweird.f32 %v263
    %v269 = vsel %vm268, %v263, %v267
    %v270 = vmul.f32 %v259, %v269
    %v271 = vmul.f32 %v262, %v269
    %v272 = vsub.f32 %v249, %v270
    %v273 = vsub.f32 %v252, %v271
    %v274 = vmul.f32 %v272, %v272
    %v275 = vmul.f32 %v273, %v273
    %v276 = vsel %vm256, %v274, 0.0
    %277 = vadd.xlane.f32.xlu0 %v276
    %v278 = vpop.xlane.xlu0 %277
    %v279 = vsel %vm256, %v275, 0.0
    %280 = vadd.xlane.f32.xlu0 %v279
    %v281 = vpop.xlane.xlu0 %280
    %v282 = vmul.f32 %v278, %v269
    %v283 = vmul.f32 %v281, %v269
    %v284 = vadd.f32 %v282, 1e-08
    %v285 = vadd.f32 %v283, 1e-08
    %v286 = vrsqrt.pop %v284
    %v287 = vmul.f32 %v286, %v284
    %v288 = vmul.f32 %v287, %v286
    %v289 = vmul.f32 0.5, %v288
    %v290 = vsub.f32 1.5, %v289
    %v291 = vmul.f32 %v286, %v290
    %vm292 = vweird.f32 %v284
    %vm293 = vweird.f32 %v286
    %vm294 = vmor %vm292, %vm293
    %v295 = vsel %vm294, %v286, %v291
    %v296 = vrsqrt.pop %v285
    %v297 = vmul.f32 %v296, %v285
    %v298 = vmul.f32 %v297, %v296
    %v299 = vmul.f32 0.5, %v298
    %v300 = vsub.f32 1.5, %v299
    %v301 = vmul.f32 %v296, %v300
    %vm302 = vweird.f32 %v285
    %vm303 = vweird.f32 %v296
    %vm304 = vmor %vm302, %vm303
    %v305 = vsel %vm304, %v296, %v301
    %v306 = vmul.f32 %v272, %v295
    %v307 = vmul.f32 %v273, %v305
    %v309 = vperm.slane %v254, 0
    %v311 = vmul.f32 %v306, %v309
    %v312 = vmul.f32 %v307, %v309
    %v314 = vperm.slane %v255, 0
    %v316 = vadd.f32 %v311, %v314
    %v317 = vadd.f32 %v312, %v314
    %v318 = vld [vmem:[%s10] sm:$0x1]
    %v319 = vld [vmem:[%s11] sm:$0x1]
    %v320 = vsel %vm256, %v316, 0.0
    %321 = vadd.xlane.f32.xlu0 %v320
    %v322 = vpop.xlane.xlu0 %321
    %v323 = vsel %vm256, %v317, 0.0
    %324 = vadd.xlane.f32.xlu0 %v323
    %v325 = vpop.xlane.xlu0 %324
    %v326 = vmul.f32 %v322, %v269
    %v327 = vmul.f32 %v325, %v269
    %v328 = vsub.f32 %v316, %v326
    %v329 = vsub.f32 %v317, %v327
    %v330 = vmul.f32 %v328, %v328
    %v331 = vmul.f32 %v329, %v329
    %v332 = vsel %vm256, %v330, 0.0
    %333 = vadd.xlane.f32.xlu0 %v332
    %v334 = vpop.xlane.xlu0 %333
    %v335 = vsel %vm256, %v331, 0.0
    %336 = vadd.xlane.f32.xlu0 %v335
    %v337 = vpop.xlane.xlu0 %336
    %v338 = vmul.f32 %v334, %v269
    %v339 = vmul.f32 %v337, %v269
    %v340 = vadd.f32 %v338, 1e-06
    %v341 = vadd.f32 %v339, 1e-06
    %v342 = vrsqrt.pop %v340
    %v343 = vmul.f32 %v342, %v340
    %v344 = vmul.f32 %v343, %v342
    %v345 = vmul.f32 0.5, %v344
    %v346 = vsub.f32 1.5, %v345
    %v347 = vmul.f32 %v342, %v346
    %vm348 = vweird.f32 %v340
    %vm349 = vweird.f32 %v342
    %vm350 = vmor %vm348, %vm349
    %v351 = vsel %vm350, %v342, %v347
    %v352 = vrsqrt.pop %v341
    %v353 = vmul.f32 %v352, %v341
    %v354 = vmul.f32 %v353, %v352
    %v355 = vmul.f32 0.5, %v354
    %v356 = vsub.f32 1.5, %v355
    %v357 = vmul.f32 %v352, %v356
    %vm358 = vweird.f32 %v341
    %vm359 = vweird.f32 %v352
    %vm360 = vmor %vm358, %vm359
    %v361 = vsel %vm360, %v352, %v357
    %v362 = vmul.f32 %v328, %v351
    %v363 = vmul.f32 %v329, %v361
    %v365 = vperm.slane %v318, 0
    %v367 = vmul.f32 %v362, %v365
    %v368 = vmul.f32 %v363, %v365
    %v370 = vperm.slane %v319, 0
    %v372 = vadd.f32 %v367, %v370
    %v373 = vadd.f32 %v368, %v370
    %v374 = vld [vmem:[%s12] sm:$0xff]
    %v375 = vld [vmem:[%s12 + $0x8] sm:$0xff]
    %v376 = vld [vmem:[%s12 + $0x10] sm:$0xff]
    %v377 = vld [vmem:[%s12 + $0x18] sm:$0xff]
    %v378 = vld [vmem:[%s13] sm:$0x1]
    %v379 = vperm.slane %v378, 0
    %v381 = vsel %vm256, %v372, 0
    %v384 = vsel %vm256, %v373, 0
    %386 = vmatpush.msra.mxu0 0.0
    %387 = vmatpush.msra.mxu0 0.0
    %388 = vmatpush.msra.mxu0 0.0
    %389 = vmatpush.msra.mxu0 0.0
    %390 = vmatpush.msra.mxu0 0.0
    %391 = vmatpush.msra.mxu0 0.0
    %392 = vmatpush.msra.mxu0 0.0
    %393 = vmatpush.msra.mxu0 0.0
    %394 = vmatpush.msra.mxu0 0.0
    %395 = vmatpush.msra.mxu0 0.0
    %396 = vmatpush.msra.mxu0 0.0
    %397 = vmatpush.msra.mxu0 0.0
    %398 = vmatpush.msra.mxu0 %v377
    %399 = vmatpush.msra.mxu0 %v376
    %400 = vmatpush.msra.mxu0 %v375
    %401 = vmatpush.msra.mxu0 %v374
    %402 = vmatmul.f32.gmra.mxu0 %v381
    %v403 = vpop.f32.mrf.mxu0
    %v404 = vadd.f32 %v379, %v403
    %405 = vmatmul.f32.gmra.mxu0 %v384
    %v406 = vpop.f32.mrf.mxu0
    %v407 = vadd.f32 %v379, %v406
    %408 = vdwg.mxu0
    %v409 = vld [vmem:[%s14] sm:$0xff]
    %v410 = vld [vmem:[%s14 + $0x8] sm:$0xff]
    %v411 = vld [vmem:[%s14 + $0x10] sm:$0xff]
    %v412 = vld [vmem:[%s14 + $0x18] sm:$0xff]
    %v413 = vld [vmem:[%s15] sm:$0x1]
    %v414 = vperm.slane %v413, 0
    %415 = vmatpush.msra.mxu0 0.0
    %416 = vmatpush.msra.mxu0 0.0
    %417 = vmatpush.msra.mxu0 0.0
    %418 = vmatpush.msra.mxu0 0.0
    %419 = vmatpush.msra.mxu0 0.0
    %420 = vmatpush.msra.mxu0 0.0
    %421 = vmatpush.msra.mxu0 0.0
    %422 = vmatpush.msra.mxu0 0.0
    %423 = vmatpush.msra.mxu0 0.0
    %424 = vmatpush.msra.mxu0 0.0
    %425 = vmatpush.msra.mxu0 0.0
    %426 = vmatpush.msra.mxu0 0.0
    %427 = vmatpush.msra.mxu0 %v412
    %428 = vmatpush.msra.mxu0 %v411
    %429 = vmatpush.msra.mxu0 %v410
    %430 = vmatpush.msra.mxu0 %v409
    %431 = vmatmul.f32.gmra.mxu0 %v381
    %v432 = vpop.f32.mrf.mxu0
    %v433 = vadd.f32 %v414, %v432
    %434 = vmatmul.f32.gmra.mxu0 %v384
    %v435 = vpop.f32.mrf.mxu0
    %v436 = vadd.f32 %v414, %v435
    %437 = vdwg.mxu0
    %v438 = vld [vmem:[%s16] sm:$0xff]
    %v439 = vld [vmem:[%s16 + $0x8] sm:$0xff]
    %v440 = vld [vmem:[%s16 + $0x10] sm:$0xff]
    %v441 = vld [vmem:[%s16 + $0x18] sm:$0xff]
    %v442 = vld [vmem:[%s17] sm:$0x1]
    %v443 = vperm.slane %v442, 0
    %444 = vmatpush.msra.mxu0 0.0
    %445 = vmatpush.msra.mxu0 0.0
    %446 = vmatpush.msra.mxu0 0.0
    %447 = vmatpush.msra.mxu0 0.0
    %448 = vmatpush.msra.mxu0 0.0
    %449 = vmatpush.msra.mxu0 0.0
    %450 = vmatpush.msra.mxu0 0.0
    %451 = vmatpush.msra.mxu0 0.0
    %452 = vmatpush.msra.mxu0 0.0
    %453 = vmatpush.msra.mxu0 0.0
    %454 = vmatpush.msra.mxu0 0.0
    %455 = vmatpush.msra.mxu0 0.0
    %456 = vmatpush.msra.mxu0 %v441
    %457 = vmatpush.msra.mxu0 %v440
    %458 = vmatpush.msra.mxu0 %v439
    %459 = vmatpush.msra.mxu0 %v438
    %460 = vmatmul.f32.gmra.mxu0 %v381
    %v461 = vpop.f32.mrf.mxu0
    %v462 = vadd.f32 %v443, %v461
    %463 = vmatmul.f32.gmra.mxu0 %v384
    %v464 = vpop.f32.mrf.mxu0
    %v465 = vadd.f32 %v443, %v464
    %466 = vdwg.mxu0
    %vm467 = vcmask 130048
    %v469 = vsel %vm467, %v404, 0
    %v472 = vsel %vm467, %v407, 0
    %v475 = vsel %vm467, %v433, 0
    %v478 = vsel %vm467, %v436, 0
    %480 = vmatpush.xpose.msra.mxu0 0.0
    %481 = vmatpush.xpose.msra.mxu0 0.0
    %482 = vmatpush.xpose.msra.mxu0 0.0
    %483 = vmatpush.xpose.msra.mxu0 0.0
    %484 = vmatpush.xpose.msra.mxu0 0.0
    %485 = vmatpush.xpose.msra.mxu0 0.0
    %486 = vmatpush.xpose.msra.mxu0 0.0
    %487 = vmatpush.xpose.msra.mxu0 0.0
    %488 = vmatpush.xpose.msra.mxu0 0.0
    %489 = vmatpush.xpose.msra.mxu0 0.0
    %490 = vmatpush.xpose.msra.mxu0 0.0
    %491 = vmatpush.xpose.msra.mxu0 0.0
    %492 = vmatpush.xpose.msra.mxu0 0.0
    %493 = vmatpush.xpose.msra.mxu0 0.0
    %494 = vmatpush.xpose.msra.mxu0 %v478
    %495 = vmatpush.xpose.msra.mxu0 %v475
    %496 = vmatmul.f32.gmra.mxu0 %v469
    %v497 = vpop.f32.mrf.mxu0
    %v498 = vadd.f32 0.0, %v497
    %499 = vmatmul.f32.gmra.mxu0 %v472
    %v500 = vpop.f32.mrf.mxu0
    %v501 = vadd.f32 0.0, %v500
    %502 = vdwg.mxu0
    %v503 = vmul.f32 %v498, 0.25
    %v504 = vmul.f32 %v501, 0.25
    %v505 = vadd.f32 %v503, %v222
    %v506 = vadd.f32 %v504, %v223
    %v507 = vsel %vm467, %v505, -inf
    %508 = vmax.xlane.f32.xlu0 %v507
    %v509 = vpop.xlane.xlu0 %508
    %v510 = vsel %vm467, %v506, -inf
    %511 = vmax.xlane.f32.xlu0 %v510
    %v512 = vpop.xlane.xlu0 %511
    %v513 = vsub.f32 %v505, %v509
    %v514 = vsub.f32 %v506, %v512
    %v515 = vmul.f32 %v513, 1.442695
    %v516 = vpow.pop %v515
    %v517 = vmul.f32 %v514, 1.442695
    %v518 = vpow.pop %v517
    %v519 = vsel %vm467, %v516, 0.0
    %520 = vadd.xlane.f32.xlu0 %v519
    %v521 = vpop.xlane.xlu0 %520
    %v522 = vsel %vm467, %v518, 0.0
    %523 = vadd.xlane.f32.xlu0 %v522
    %v524 = vpop.xlane.xlu0 %523
    %v525 = vrcp.pop %v521
    %v526 = vmul.f32 %v521, %v525
    %v527 = vsub.f32 1.0, %v526
    %v528 = vmul.f32 %v525, %v527
    %v529 = vadd.f32 %v525, %v528
    %vm530 = vweird.f32 %v521
    %vm531 = vweird.f32 %v525
    %vm532 = vmor %vm530, %vm531
    %v533 = vsel %vm532, %v525, %v529
    %v534 = vand.u32 2147483647, %v521
    %vm535 = vcmp.eq.f32.partialorder %v534, 8.507059e+37
    %v536 = vand.u32 %v521, 2147483648
    %v537 = vor.u32 1.1754944e-38, %v536
    %v538 = vsel %vm535, %v537, %v533
    %v539 = vmul.f32 %v516, %v538
    %v540 = vrcp.pop %v524
    %v541 = vmul.f32 %v524, %v540
    %v542 = vsub.f32 1.0, %v541
    %v543 = vmul.f32 %v540, %v542
    %v544 = vadd.f32 %v540, %v543
    %vm545 = vweird.f32 %v524
    %vm546 = vweird.f32 %v540
    %vm547 = vmor %vm545, %vm546
    %v548 = vsel %vm547, %v540, %v544
    %v549 = vand.u32 2147483647, %v524
    %vm550 = vcmp.eq.f32.partialorder %v549, 8.507059e+37
    %v551 = vand.u32 %v524, 2147483648
    %v552 = vor.u32 1.1754944e-38, %v551
    %v553 = vsel %vm550, %v552, %v548
    %v554 = vmul.f32 %v518, %v553
    %v556 = vsel %vm467, %v539, 0
    %v559 = vsel %vm467, %v554, 0
    %561 = vmatpush.msra.mxu0 0.0
    %562 = vmatpush.msra.mxu0 0.0
    %563 = vmatpush.msra.mxu0 0.0
    %564 = vmatpush.msra.mxu0 0.0
    %565 = vmatpush.msra.mxu0 0.0
    %566 = vmatpush.msra.mxu0 0.0
    %567 = vmatpush.msra.mxu0 0.0
    %568 = vmatpush.msra.mxu0 0.0
    %569 = vmatpush.msra.mxu0 0.0
    %570 = vmatpush.msra.mxu0 0.0
    %571 = vmatpush.msra.mxu0 0.0
    %572 = vmatpush.msra.mxu0 0.0
    %573 = vmatpush.msra.mxu0 0.0
    %574 = vmatpush.msra.mxu0 0.0
    %575 = vmatpush.msra.mxu0 %v465
    %576 = vmatpush.msra.mxu0 %v462
    %577 = vmatmul.f32.gmra.mxu0 %v556
    %v578 = vpop.f32.mrf.mxu0
    %v579 = vadd.f32 0.0, %v578
    %580 = vmatmul.f32.gmra.mxu0 %v559
    %v581 = vpop.f32.mrf.mxu0
    %v582 = vadd.f32 0.0, %v581
    %583 = vdwg.mxu0
    %v584 = vld [vmem:[%s18] sm:$0xff]
    %v585 = vld [vmem:[%s18 + $0x8] sm:$0xff]
    %s586 = scalar_lea.vmem %s12, 32
    %v587 = vld [vmem:[%s586] sm:$0xff]
    %v588 = vld [vmem:[%s586 + $0x8] sm:$0xff]
    %v589 = vld [vmem:[%s586 + $0x10] sm:$0xff]
    %v590 = vld [vmem:[%s586 + $0x18] sm:$0xff]
    %v591 = vld [vmem:[%s13 + $0x1] sm:$0x1]
    %v592 = vperm.slane %v591, 0
    %593 = vmatpush.msra.mxu0 0.0
    %594 = vmatpush.msra.mxu0 0.0
    %595 = vmatpush.msra.mxu0 0.0
    %596 = vmatpush.msra.mxu0 0.0
    %597 = vmatpush.msra.mxu0 0.0
    %598 = vmatpush.msra.mxu0 0.0
    %599 = vmatpush.msra.mxu0 0.0
    %600 = vmatpush.msra.mxu0 0.0
    %601 = vmatpush.msra.mxu0 0.0
    %602 = vmatpush.msra.mxu0 0.0
    %603 = vmatpush.msra.mxu0 0.0
    %604 = vmatpush.msra.mxu0 0.0
    %605 = vmatpush.msra.mxu0 %v590
    %606 = vmatpush.msra.mxu0 %v589
    %607 = vmatpush.msra.mxu0 %v588
    %608 = vmatpush.msra.mxu0 %v587
    %609 = vmatmul.f32.gmra.mxu0 %v381
    %v610 = vpop.f32.mrf.mxu0
    %v611 = vadd.f32 %v592, %v610
    %612 = vmatmul.f32.gmra.mxu0 %v384
    %v613 = vpop.f32.mrf.mxu0
    %v614 = vadd.f32 %v592, %v613
    %615 = vdwg.mxu0
    %s616 = scalar_lea.vmem %s14, 32
    %v617 = vld [vmem:[%s616] sm:$0xff]
    %v618 = vld [vmem:[%s616 + $0x8] sm:$0xff]
    %v619 = vld [vmem:[%s616 + $0x10] sm:$0xff]
    %v620 = vld [vmem:[%s616 + $0x18] sm:$0xff]
    %v621 = vld [vmem:[%s15 + $0x1] sm:$0x1]
    %v622 = vperm.slane %v621, 0
    %623 = vmatpush.msra.mxu0 0.0
    %624 = vmatpush.msra.mxu0 0.0
    %625 = vmatpush.msra.mxu0 0.0
    %626 = vmatpush.msra.mxu0 0.0
    %627 = vmatpush.msra.mxu0 0.0
    %628 = vmatpush.msra.mxu0 0.0
    %629 = vmatpush.msra.mxu0 0.0
    %630 = vmatpush.msra.mxu0 0.0
    %631 = vmatpush.msra.mxu0 0.0
    %632 = vmatpush.msra.mxu0 0.0
    %633 = vmatpush.msra.mxu0 0.0
    %634 = vmatpush.msra.mxu0 0.0
    %635 = vmatpush.msra.mxu0 %v620
    %636 = vmatpush.msra.mxu0 %v619
    %637 = vmatpush.msra.mxu0 %v618
    %638 = vmatpush.msra.mxu0 %v617
    %639 = vmatmul.f32.gmra.mxu0 %v381
    %v640 = vpop.f32.mrf.mxu0
    %v641 = vadd.f32 %v622, %v640
    %642 = vmatmul.f32.gmra.mxu0 %v384
    %v643 = vpop.f32.mrf.mxu0
    %v644 = vadd.f32 %v622, %v643
    %645 = vdwg.mxu0
    %s646 = scalar_lea.vmem %s16, 32
    %v647 = vld [vmem:[%s646] sm:$0xff]
    %v648 = vld [vmem:[%s646 + $0x8] sm:$0xff]
    %v649 = vld [vmem:[%s646 + $0x10] sm:$0xff]
    %v650 = vld [vmem:[%s646 + $0x18] sm:$0xff]
    %v651 = vld [vmem:[%s17 + $0x1] sm:$0x1]
    %v652 = vperm.slane %v651, 0
    %653 = vmatpush.msra.mxu0 0.0
    %654 = vmatpush.msra.mxu0 0.0
    %655 = vmatpush.msra.mxu0 0.0
    %656 = vmatpush.msra.mxu0 0.0
    %657 = vmatpush.msra.mxu0 0.0
    %658 = vmatpush.msra.mxu0 0.0
    %659 = vmatpush.msra.mxu0 0.0
    %660 = vmatpush.msra.mxu0 0.0
    %661 = vmatpush.msra.mxu0 0.0
    %662 = vmatpush.msra.mxu0 0.0
    %663 = vmatpush.msra.mxu0 0.0
    %664 = vmatpush.msra.mxu0 0.0
    %665 = vmatpush.msra.mxu0 %v650
    %666 = vmatpush.msra.mxu0 %v649
    %667 = vmatpush.msra.mxu0 %v648
    %668 = vmatpush.msra.mxu0 %v647
    %669 = vmatmul.f32.gmra.mxu0 %v381
    %v670 = vpop.f32.mrf.mxu0
    %v671 = vadd.f32 %v652, %v670
    %672 = vmatmul.f32.gmra.mxu0 %v384
    %v673 = vpop.f32.mrf.mxu0
    %v674 = vadd.f32 %v652, %v673
    %675 = vdwg.mxu0
    %v677 = vsel %vm467, %v611, 0
    %v680 = vsel %vm467, %v614, 0
    %v683 = vsel %vm467, %v641, 0
    %v686 = vsel %vm467, %v644, 0
    %688 = vmatpush.xpose.msra.mxu0 0.0
    %689 = vmatpush.xpose.msra.mxu0 0.0
    %690 = vmatpush.xpose.msra.mxu0 0.0
    %691 = vmatpush.xpose.msra.mxu0 0.0
    %692 = vmatpush.xpose.msra.mxu0 0.0
    %693 = vmatpush.xpose.msra.mxu0 0.0
    %694 = vmatpush.xpose.msra.mxu0 0.0
    %695 = vmatpush.xpose.msra.mxu0 0.0
    %696 = vmatpush.xpose.msra.mxu0 0.0
    %697 = vmatpush.xpose.msra.mxu0 0.0
    %698 = vmatpush.xpose.msra.mxu0 0.0
    %699 = vmatpush.xpose.msra.mxu0 0.0
    %700 = vmatpush.xpose.msra.mxu0 0.0
    %701 = vmatpush.xpose.msra.mxu0 0.0
    %702 = vmatpush.xpose.msra.mxu0 %v686
    %703 = vmatpush.xpose.msra.mxu0 %v683
    %704 = vmatmul.f32.gmra.mxu0 %v677
    %v705 = vpop.f32.mrf.mxu0
    %v706 = vadd.f32 0.0, %v705
    %707 = vmatmul.f32.gmra.mxu0 %v680
    %v708 = vpop.f32.mrf.mxu0
    %v709 = vadd.f32 0.0, %v708
    %710 = vdwg.mxu0
    %v711 = vmul.f32 %v706, 0.25
    %v712 = vmul.f32 %v709, 0.25
    %v713 = vadd.f32 %v711, %v222
    %v714 = vadd.f32 %v712, %v223
    %v715 = vsel %vm467, %v713, -inf
    %716 = vmax.xlane.f32.xlu0 %v715
    %v717 = vpop.xlane.xlu0 %716
    %v718 = vsel %vm467, %v714, -inf
    %719 = vmax.xlane.f32.xlu0 %v718
    %v720 = vpop.xlane.xlu0 %719
    %v721 = vsub.f32 %v713, %v717
    %v722 = vsub.f32 %v714, %v720
    %v723 = vmul.f32 %v721, 1.442695
    %v724 = vpow.pop %v723
    %v725 = vmul.f32 %v722, 1.442695
    %v726 = vpow.pop %v725
    %v727 = vsel %vm467, %v724, 0.0
    %728 = vadd.xlane.f32.xlu0 %v727
    %v729 = vpop.xlane.xlu0 %728
    %v730 = vsel %vm467, %v726, 0.0
    %731 = vadd.xlane.f32.xlu0 %v730
    %v732 = vpop.xlane.xlu0 %731
    %v733 = vrcp.pop %v729
    %v734 = vmul.f32 %v729, %v733
    %v735 = vsub.f32 1.0, %v734
    %v736 = vmul.f32 %v733, %v735
    %v737 = vadd.f32 %v733, %v736
    %vm738 = vweird.f32 %v729
    %vm739 = vweird.f32 %v733
    %vm740 = vmor %vm738, %vm739
    %v741 = vsel %vm740, %v733, %v737
    %v742 = vand.u32 2147483647, %v729
    %vm743 = vcmp.eq.f32.partialorder %v742, 8.507059e+37
    %v744 = vand.u32 %v729, 2147483648
    %v745 = vor.u32 1.1754944e-38, %v744
    %v746 = vsel %vm743, %v745, %v741
    %v747 = vmul.f32 %v724, %v746
    %v748 = vrcp.pop %v732
    %v749 = vmul.f32 %v732, %v748
    %v750 = vsub.f32 1.0, %v749
    %v751 = vmul.f32 %v748, %v750
    %v752 = vadd.f32 %v748, %v751
    %vm753 = vweird.f32 %v732
    %vm754 = vweird.f32 %v748
    %vm755 = vmor %vm753, %vm754
    %v756 = vsel %vm755, %v748, %v752
    %v757 = vand.u32 2147483647, %v732
    %vm758 = vcmp.eq.f32.partialorder %v757, 8.507059e+37
    %v759 = vand.u32 %v732, 2147483648
    %v760 = vor.u32 1.1754944e-38, %v759
    %v761 = vsel %vm758, %v760, %v756
    %v762 = vmul.f32 %v726, %v761
    %v764 = vsel %vm467, %v747, 0
    %v767 = vsel %vm467, %v762, 0
    %769 = vmatpush.msra.mxu0 0.0
    %770 = vmatpush.msra.mxu0 0.0
    %771 = vmatpush.msra.mxu0 0.0
    %772 = vmatpush.msra.mxu0 0.0
    %773 = vmatpush.msra.mxu0 0.0
    %774 = vmatpush.msra.mxu0 0.0
    %775 = vmatpush.msra.mxu0 0.0
    %776 = vmatpush.msra.mxu0 0.0
    %777 = vmatpush.msra.mxu0 0.0
    %778 = vmatpush.msra.mxu0 0.0
    %779 = vmatpush.msra.mxu0 0.0
    %780 = vmatpush.msra.mxu0 0.0
    %781 = vmatpush.msra.mxu0 0.0
    %782 = vmatpush.msra.mxu0 0.0
    %783 = vmatpush.msra.mxu0 %v674
    %784 = vmatpush.msra.mxu0 %v671
    %785 = vmatmul.f32.gmra.mxu0 %v764
    %v786 = vpop.f32.mrf.mxu0
    %v787 = vadd.f32 0.0, %v786
    %788 = vmatmul.f32.gmra.mxu0 %v767
    %v789 = vpop.f32.mrf.mxu0
    %v790 = vadd.f32 0.0, %v789
    %791 = vdwg.mxu0
    %s792 = scalar_lea.vmem %s18, 16
    %v793 = vld [vmem:[%s792] sm:$0xff]
    %v794 = vld [vmem:[%s792 + $0x8] sm:$0xff]
    %v796 = vsel %vm467, %v787, 0
    %v799 = vsel %vm467, %v790, 0
    %801 = vmatpush.msra.mxu0 0.0
    %802 = vmatpush.msra.mxu0 0.0
    %803 = vmatpush.msra.mxu0 0.0
    %804 = vmatpush.msra.mxu0 0.0
    %805 = vmatpush.msra.mxu0 0.0
    %806 = vmatpush.msra.mxu0 0.0
    %807 = vmatpush.msra.mxu0 0.0
    %808 = vmatpush.msra.mxu0 0.0
    %809 = vmatpush.msra.mxu0 0.0
    %810 = vmatpush.msra.mxu0 0.0
    %811 = vmatpush.msra.mxu0 0.0
    %812 = vmatpush.msra.mxu0 0.0
    %813 = vmatpush.msra.mxu0 0.0
    %814 = vmatpush.msra.mxu0 0.0
    %815 = vmatpush.msra.mxu0 %v794
    %816 = vmatpush.msra.mxu0 %v793
    %817 = vmatmul.f32.gmra.mxu0 %v796
    %v818 = vpop.f32.mrf.mxu0
    %v819 = vadd.f32 0.0, %v818
    %820 = vmatmul.f32.gmra.mxu0 %v799
    %v821 = vpop.f32.mrf.mxu0
    %v822 = vadd.f32 0.0, %v821
    %823 = vdwg.mxu0
    %v825 = vsel %vm467, %v579, 0
    %v828 = vsel %vm467, %v582, 0
    %830 = vmatpush.msra.mxu0 0.0
    %831 = vmatpush.msra.mxu0 0.0
    %832 = vmatpush.msra.mxu0 0.0
    %833 = vmatpush.msra.mxu0 0.0
    %834 = vmatpush.msra.mxu0 0.0
    %835 = vmatpush.msra.mxu0 0.0
    %836 = vmatpush.msra.mxu0 0.0
    %837 = vmatpush.msra.mxu0 0.0
    %838 = vmatpush.msra.mxu0 0.0
    %839 = vmatpush.msra.mxu0 0.0
    %840 = vmatpush.msra.mxu0 0.0
    %841 = vmatpush.msra.mxu0 0.0
    %842 = vmatpush.msra.mxu0 0.0
    %843 = vmatpush.msra.mxu0 0.0
    %844 = vmatpush.msra.mxu0 %v585
    %845 = vmatpush.msra.mxu0 %v584
    %846 = vmatmul.f32.gmra.mxu0 %v825
    %v847 = vpop.f32.mrf.mxu0
    %v848 = vadd.f32 %v819, %v847
    %849 = vmatmul.f32.gmra.mxu0 %v828
    %v850 = vpop.f32.mrf.mxu0
    %v851 = vadd.f32 %v822, %v850
    %852 = vdwg.mxu0
    %v853 = vadd.f32 %v316, %v848
    %v854 = vadd.f32 %v317, %v851
    %v855 = vld [vmem:[%s19] sm:$0x1]
    %v857 = vperm.slane %v855, 0
    %v859 = vadd.f32 %v853, %v857
    %v860 = vadd.f32 %v854, %v857
    %v861 = vld [vmem:[%s20] sm:$0x1]
    %v862 = vld [vmem:[%s21] sm:$0x1]
    %v863 = vsel %vm256, %v859, 0.0
    %864 = vadd.xlane.f32.xlu0 %v863
    %v865 = vpop.xlane.xlu0 %864
    %v866 = vsel %vm256, %v860, 0.0
    %867 = vadd.xlane.f32.xlu0 %v866
    %v868 = vpop.xlane.xlu0 %867
    %v869 = vmul.f32 %v865, %v269
    %v870 = vmul.f32 %v868, %v269
    %v871 = vsub.f32 %v859, %v869
    %v872 = vsub.f32 %v860, %v870
    %v873 = vmul.f32 %v871, %v871
    %v874 = vmul.f32 %v872, %v872
    %v875 = vsel %vm256, %v873, 0.0
    %876 = vadd.xlane.f32.xlu0 %v875
    %v877 = vpop.xlane.xlu0 %876
    %v878 = vsel %vm256, %v874, 0.0
    %879 = vadd.xlane.f32.xlu0 %v878
    %v880 = vpop.xlane.xlu0 %879
    %v881 = vmul.f32 %v877, %v269
    %v882 = vmul.f32 %v880, %v269
    %v883 = vadd.f32 %v881, 1e-06
    %v884 = vadd.f32 %v882, 1e-06
    %v885 = vrsqrt.pop %v883
    %v886 = vmul.f32 %v885, %v883
    %v887 = vmul.f32 %v886, %v885
    %v888 = vmul.f32 0.5, %v887
    %v889 = vsub.f32 1.5, %v888
    %v890 = vmul.f32 %v885, %v889
    %vm891 = vweird.f32 %v883
    %vm892 = vweird.f32 %v885
    %vm893 = vmor %vm891, %vm892
    %v894 = vsel %vm893, %v885, %v890
    %v895 = vrsqrt.pop %v884
    %v896 = vmul.f32 %v895, %v884
    %v897 = vmul.f32 %v896, %v895
    %v898 = vmul.f32 0.5, %v897
    %v899 = vsub.f32 1.5, %v898
    %v900 = vmul.f32 %v895, %v899
    %vm901 = vweird.f32 %v884
    %vm902 = vweird.f32 %v895
    %vm903 = vmor %vm901, %vm902
    %v904 = vsel %vm903, %v895, %v900
    %v905 = vmul.f32 %v871, %v894
    %v906 = vmul.f32 %v872, %v904
    %v908 = vperm.slane %v861, 0
    %v910 = vmul.f32 %v905, %v908
    %v911 = vmul.f32 %v906, %v908
    %v913 = vperm.slane %v862, 0
    %v915 = vadd.f32 %v910, %v913
    %v916 = vadd.f32 %v911, %v913
    %v917 = vld [vmem:[%s22] sm:$0xff]
    %v918 = vld [vmem:[%s22 + $0x8] sm:$0xff]
    %v919 = vld [vmem:[%s22 + $0x10] sm:$0xff]
    %v920 = vld [vmem:[%s22 + $0x18] sm:$0xff]
    %v921 = vld [vmem:[%s23] sm:$0x1]
    %v923 = vperm.slane %v921, 0
    %v926 = vsel %vm256, %v915, 0
    %v929 = vsel %vm256, %v916, 0
    %931 = vmatpush.msra.mxu0 0.0
    %932 = vmatpush.msra.mxu0 0.0
    %933 = vmatpush.msra.mxu0 0.0
    %934 = vmatpush.msra.mxu0 0.0
    %935 = vmatpush.msra.mxu0 0.0
    %936 = vmatpush.msra.mxu0 0.0
    %937 = vmatpush.msra.mxu0 0.0
    %938 = vmatpush.msra.mxu0 0.0
    %939 = vmatpush.msra.mxu0 0.0
    %940 = vmatpush.msra.mxu0 0.0
    %941 = vmatpush.msra.mxu0 0.0
    %942 = vmatpush.msra.mxu0 0.0
    %943 = vmatpush.msra.mxu0 %v920
    %944 = vmatpush.msra.mxu0 %v919
    %945 = vmatpush.msra.mxu0 %v918
    %946 = vmatpush.msra.mxu0 %v917
    %947 = vmatmul.f32.gmra.mxu0 %v926
    %v948 = vpop.f32.mrf.mxu0
    %v949 = vadd.f32 %v923, %v948
    %950 = vmatmul.f32.gmra.mxu0 %v929
    %v951 = vpop.f32.mrf.mxu0
    %v952 = vadd.f32 %v923, %v951
    %953 = vdwg.mxu0
    %v954 = vmul.f32 %v949, %v949
    %v955 = vmul.f32 %v952, %v952
    %v956 = vmul.f32 %v949, %v954
    %v957 = vmul.f32 %v952, %v955
    %v958 = vmul.f32 %v956, 0.044715
    %v959 = vmul.f32 %v957, 0.044715
    %v960 = vadd.f32 %v949, %v958
    %v961 = vadd.f32 %v952, %v959
    %v962 = vmul.f32 %v960, 0.7978846
    %v963 = vmul.f32 %v961, 0.7978846
    %v964 = vtanh.pop %v962
    %v965 = vtanh.pop %v963
    %v966 = vadd.f32 %v964, 1.0
    %v967 = vadd.f32 %v965, 1.0
    %v968 = vmul.f32 %v966, 0.5
    %v969 = vmul.f32 %v967, 0.5
    %v970 = vmul.f32 %v949, %v968
    %v971 = vmul.f32 %v952, %v969
    %v972 = vld [vmem:[%s24] sm:$0xff]
    %v973 = vld [vmem:[%s24 + $0x8] sm:$0xff]
    %v974 = vld [vmem:[%s24 + $0x10] sm:$0xff]
    %v975 = vld [vmem:[%s24 + $0x18] sm:$0xff]
    %v976 = vld [vmem:[%s24 + $0x20] sm:$0xff]
    %v977 = vld [vmem:[%s24 + $0x28] sm:$0xff]
    %v978 = vld [vmem:[%s24 + $0x30] sm:$0xff]
    %v979 = vld [vmem:[%s24 + $0x38] sm:$0xff]
    %v980 = vld [vmem:[%s24 + $0x40] sm:$0xff]
    %v981 = vld [vmem:[%s24 + $0x48] sm:$0xff]
    %v982 = vld [vmem:[%s24 + $0x50] sm:$0xff]
    %v983 = vld [vmem:[%s24 + $0x58] sm:$0xff]
    %v984 = vld [vmem:[%s24 + $0x60] sm:$0xff]
    %v985 = vld [vmem:[%s24 + $0x68] sm:$0xff]
    %v986 = vld [vmem:[%s24 + $0x70] sm:$0xff]
    %v987 = vld [vmem:[%s24 + $0x78] sm:$0xff]
    %v988 = vld [vmem:[%s25] sm:$0x1]
    %v990 = vperm.slane %v988, 0
    %992 = vmatpush.msra.mxu0 %v987
    %993 = vmatpush.msra.mxu0 %v986
    %994 = vmatpush.msra.mxu0 %v985
    %995 = vmatpush.msra.mxu0 %v984
    %996 = vmatpush.msra.mxu0 %v983
    %997 = vmatpush.msra.mxu0 %v982
    %998 = vmatpush.msra.mxu0 %v981
    %999 = vmatpush.msra.mxu0 %v980
    %1000 = vmatpush.msra.mxu0 %v979
    %1001 = vmatpush.msra.mxu0 %v978
    %1002 = vmatpush.msra.mxu0 %v977
    %1003 = vmatpush.msra.mxu0 %v976
    %1004 = vmatpush.msra.mxu0 %v975
    %1005 = vmatpush.msra.mxu0 %v974
    %1006 = vmatpush.msra.mxu0 %v973
    %1007 = vmatpush.msra.mxu0 %v972
    %1008 = vmatmul.f32.gmra.mxu0 %v970
    %v1009 = vpop.f32.mrf.mxu0
    %v1010 = vadd.f32 %v990, %v1009
    %1011 = vmatmul.f32.gmra.mxu0 %v971
    %v1012 = vpop.f32.mrf.mxu0
    %v1013 = vadd.f32 %v990, %v1012
    %1014 = vdwg.mxu0
    %v1015 = vadd.f32 %v859, %v1010
    %v1016 = vadd.f32 %v860, %v1013
    %v1017 = vmul.f32 %v1015, %v150
    %v1018 = vmul.f32 %v1016, %v153
    %v1019 = vsel %vm256, %v1017, 0.0
    %1020 = vadd.xlane.f32.xlu0 %v1019
    %v1021 = vpop.xlane.xlu0 %1020
    %v1022 = vsel %vm256, %v1018, 0.0
    %1023 = vadd.xlane.f32.xlu0 %v1022
    %v1024 = vpop.xlane.xlu0 %1023
    %v1025 = vmul.f32 %v1015, %v193
    %v1026 = vmul.f32 %v1016, %v196
    %v1027 = vsel %vm256, %v1025, 0.0
    %1028 = vadd.xlane.f32.xlu0 %v1027
    %v1029 = vpop.xlane.xlu0 %1028
    %v1030 = vsel %vm256, %v1026, 0.0
    %1031 = vadd.xlane.f32.xlu0 %v1030
    %v1032 = vpop.xlane.xlu0 %1031
    %v1033 = vld [vmem:[%s4] sm:$0xff]
    %v1034 = vld [vmem:[%s4 + $0x8] sm:$0xff]
    %vm1035 = vcmp.ne.f32.partialorder %v1033, 0.0
    %vm1036 = vcmp.ne.f32.partialorder %v1034, 0.0
    %v1037 = vsel %vm1035, 1, 0
    %v1038 = vsel %vm1036, 1, 0
    %v1039 = vcvt.s32.f32 %v1037
    %v1040 = vcvt.s32.f32 %v1038
    %v1041 = vsub.f32 0.0, %v1021
    %v1042 = vsub.f32 0.0, %v1024
    %v1043 = vmax.f32 %v1041, 0.0
    %v1044 = vmax.f32 %v1042, 0.0
    %vm1045 = vcmp.ne.f32.partialorder %v1041, %v1041
    %vm1046 = vcmp.ne.f32.partialorder %v1042, %v1042
    %v1047 = vadd.f32 %v1041, 0.0
    %v1048 = vadd.f32 %v1042, 0.0
    %v1049 = vand.u32 2147483647, %v1041
    %v1050 = vand.u32 2147483647, %v1042
    %v1051 = vsub.f32 0.0, %v1049
    %v1052 = vsub.f32 0.0, %v1050
    %v1053 = vmul.f32 %v1051, 1.442695
    %v1054 = vpow.pop %v1053
    %v1055 = vmul.f32 %v1052, 1.442695
    %v1056 = vpow.pop %v1055
    %v1057 = vadd.f32 %v1054, 1.0
    %v1058 = vlog2.pop %v1057
    %v1059 = vmul.f32 %v1058, 0.6931472
    %v1060 = vmul.f32 -0.5, %v1054
    %v1061 = vadd.f32 %v1060, 1.0
    %v1062 = vmul.f32 %v1061, %v1054
    %v1063 = vand.u32 2147483647, %v1054
    %vm1064 = vcmp.lt.f32.partialorder %v1063, 0.0004427343
    %v1065 = vsel %vm1064, %v1062, %v1059
    %v1066 = vadd.f32 %v1056, 1.0
    %v1067 = vlog2.pop %v1066
    %v1068 = vmul.f32 %v1067, 0.6931472
    %v1069 = vmul.f32 -0.5, %v1056
    %v1070 = vadd.f32 %v1069, 1.0
    %v1071 = vmul.f32 %v1070, %v1056
    %v1072 = vand.u32 2147483647, %v1056
    %vm1073 = vcmp.lt.f32.partialorder %v1072, 0.0004427343
    %v1074 = vsel %vm1073, %v1071, %v1068
    %v1075 = vadd.f32 %v1043, %v1065
    %v1076 = vadd.f32 %v1044, %v1074
    %v1077 = vsel %vm1045, %v1047, %v1075
    %v1078 = vsel %vm1046, %v1048, %v1076
    %v1079 = vmax.f32 %v1029, 0.0
    %v1080 = vmax.f32 %v1032, 0.0
    %vm1081 = vcmp.ne.f32.partialorder %v1029, %v1029
    %vm1082 = vcmp.ne.f32.partialorder %v1032, %v1032
    %v1083 = vadd.f32 %v1029, 0.0
    %v1084 = vadd.f32 %v1032, 0.0
    %v1085 = vand.u32 2147483647, %v1029
    %v1086 = vand.u32 2147483647, %v1032
    %v1087 = vsub.f32 0.0, %v1085
    %v1088 = vsub.f32 0.0, %v1086
    %v1089 = vmul.f32 %v1087, 1.442695
    %v1090 = vpow.pop %v1089
    %v1091 = vmul.f32 %v1088, 1.442695
    %v1092 = vpow.pop %v1091
    %v1093 = vadd.f32 %v1090, 1.0
    %v1094 = vlog2.pop %v1093
    %v1095 = vmul.f32 %v1094, 0.6931472
    %v1096 = vmul.f32 -0.5, %v1090
    %v1097 = vadd.f32 %v1096, 1.0
    %v1098 = vmul.f32 %v1097, %v1090
    %v1099 = vand.u32 2147483647, %v1090
    %vm1100 = vcmp.lt.f32.partialorder %v1099, 0.0004427343
    %v1101 = vsel %vm1100, %v1098, %v1095
    %v1102 = vadd.f32 %v1092, 1.0
    %v1103 = vlog2.pop %v1102
    %v1104 = vmul.f32 %v1103, 0.6931472
    %v1105 = vmul.f32 -0.5, %v1092
    %v1106 = vadd.f32 %v1105, 1.0
    %v1107 = vmul.f32 %v1106, %v1092
    %v1108 = vand.u32 2147483647, %v1092
    %vm1109 = vcmp.lt.f32.partialorder %v1108, 0.0004427343
    %v1110 = vsel %vm1109, %v1107, %v1104
    %v1111 = vadd.f32 %v1079, %v1101
    %v1112 = vadd.f32 %v1080, %v1110
    %v1113 = vsel %vm1081, %v1083, %v1111
    %v1114 = vsel %vm1082, %v1084, %v1112
    %v1115 = vadd.f32 %v1077, %v1113
    %v1116 = vadd.f32 %v1078, %v1114
    %v1117 = vmul.f32 %v1115, %v1039
    %v1118 = vmul.f32 %v1116, %v1040
    %vm1119 = vcmask 7168
    %v1120 = vsel %vm1119, %v1117, 0.0
    %v1121 = vsel %vm1119, %v1118, 0.0
    %v1122 = vadd.f32 %v1120, %v1121
    %1123 = vadd.xlane.f32.xlu0 %v1122
    %v1124 = vpop.xlane.xlu0 %1123
    %v1125 = vrot.slane %v1124, 4
    %v1126 = vadd.f32 %v1124, %v1125
    %v1127 = vrot.slane %v1126, 2
    %v1128 = vadd.f32 %v1126, %v1127
    %v1129 = vrot.slane %v1128, 1
    %v1130 = vadd.f32 %v1128, %v1129
    %s1131 = vtos %v1130
    %v1132 = vstv %s1131
    %v1133 = vsel %vm1119, %v1039, 0.0
    %v1134 = vsel %vm1119, %v1040, 0.0
    %v1135 = vadd.f32 %v1133, %v1134
    %1136 = vadd.xlane.f32.xlu0 %v1135
    %v1137 = vpop.xlane.xlu0 %1136
    %v1138 = vrot.slane %v1137, 4
    %v1139 = vadd.f32 %v1137, %v1138
    %v1140 = vrot.slane %v1139, 2
    %v1141 = vadd.f32 %v1139, %v1140
    %v1142 = vrot.slane %v1141, 1
    %v1143 = vadd.f32 %v1141, %v1142
    %s1144 = vtos %v1143
    %v1145 = vstv %s1144
    %v1146 = vrcp.pop %v1145
    %v1147 = vmul.f32 %v1132, %v1146
    %vm1148 = vcmask 0
    %1149 = vst.msk [vmem:[#allocation2] sm:$0x1] %vm1148, %v1147
    // Predicated region
    $region106: #{model_forward.1} parent=1 // pred_check
      _
    $region107: #{model_forward.1} parent=1 // pred_check_branch
      %1151 = sbr.rel (0) target = $region109
    $region108: #{model_forward.1} parent=1 // pred_region
      %1153 = vsyncadd [#allocation3], 0
      %s1155 = sshll.u32 [#allocation2], 4
      %s1156 = int_to_ptr.vmem [resolvable:$true] %s1155
      %s1157 = sshll.u32 %s26, 4
      %s1158 = int_to_ptr.hbm [resolvable:$true] %s1157
      %1160 = dma.vmem_to_hbm [thread:$0]  %s1156, 16, %s1158, [#allocation3]
    $region109: #{model_forward.1} parent=1 // pred_fallthru
      _
    // Predicated region
    $region110: #{model_forward.1} parent=1 // pred_check
      _
    $region111: #{model_forward.1} parent=1 // pred_check_branch
      %1162 = sbr.rel (0) target = $region113
    $region112: #{model_forward.1} parent=1 // pred_region
      %1164 = dma.done [#allocation3], 16
    $region113: #{model_forward.1} parent=1 // pred_fallthru
      _
    %1165 = vsyncpa [#allocation3], 1

</llo_original>
